<compile_context>
chip_gen: v7x
topology: tpu7x:2x2x1
jax: 0.10.0
libtpu: 0.0.40
codegen_flags: <defaults>
</compile_context>

<pallas_src>
import math

import jax
import jax.numpy as jnp
from jax import lax
from jax.experimental import pallas as pl
from jax.experimental.pallas import tpu as pltpu

DIM = 32          # == dim == proj_dim (the torch module requires them equal)
QKV_LANES = 128   # 3*DIM fused qkv output padded to one full 128-lane vreg row
OUT_CH = 4
LAYERS = 2
VOCAB = 10
SUBLANE = 16      # bf16 sublane packing; keep packed row offsets tile-aligned


def _pad_rows(n):
    return -(-n // SUBLANE) * SUBLANE


def _vmem_bytes(shape, dtype):
    """Layout-padded VMEM footprint of one operand (sublane x 128-lane tiles)."""
    itemsize = jnp.dtype(dtype).itemsize
    sub = {4: 8, 2: 16, 1: 32}[itemsize]
    shape = tuple(shape)
    if len(shape) == 1:
        shape = (1,) + shape
    lead = 1
    for d in shape[:-2]:
        lead *= d
    rows = -(-shape[-2] // sub) * sub
    lanes = -(-shape[-1] // 128) * 128
    return lead * rows * lanes * itemsize


# ----------------------------------------------------------------------------- fused kernel
def _build_fused_kernel(node_types, edge_types, num_layers, offsets, counts, in_cnt):
    """Build the single fused forward kernel (structure is static / unrolled)."""
    T = len(node_types)
    E = len(edge_types)
    t_idx = {m: i for i, m in enumerate(node_types)}

    def mm(a, b):
        # bf16 MXU operands, f32 accumulation (per perf review).
        return jnp.dot(a.astype(jnp.bfloat16), b.astype(jnp.bfloat16),
                       preferred_element_type=jnp.float32)

    def kernel(x_ref, adj_ref, wqkv_ref, bqkv_ref, wo_ref, bo_ref,
               wl_ref, wrs_ref, bs_ref, ow_ref, ob_ref, o_ref):
        # One DMA'd packed slab, sliced per node type at static, tile-aligned
        # row offsets.  Stays VMEM/vreg resident for both layers + the head.
        xall = x_ref[...]                                     # (sum_Npad, DIM) bf16
        adj_all = adj_ref[...]                                # (E, Npad, Npad) bf16
        x = {m: xall[offsets[m]:offsets[m] + counts[m], :] for m in node_types}

        for l in range(num_layers):
            # ---- per-node-type single-head self-attention (fused 128-lane qkv) --
            xs = {}
            for m in node_types:
                p_i = l * T + t_idx[m]
                # 1/sqrt(DIM) is folded into the q block of wqkv/bqkv at pack time.
                qkv = mm(x[m], wqkv_ref[p_i]) + bqkv_ref[p_i]            # (N_m, 128) f32
                q = qkv[:, 0 * DIM:1 * DIM]
                k = qkv[:, 1 * DIM:2 * DIM]
                v = qkv[:, 2 * DIM:3 * DIM]
                # q @ k^T without an explicit transpose (contract dim 1 vs dim 1).
                s = lax.dot_general(q.astype(jnp.bfloat16), k.astype(jnp.bfloat16),
                                    (((1,), (1,)), ((), ())),
                                    preferred_element_type=jnp.float32)
                s = s - jnp.max(s, axis=-1, keepdims=True)
                p = jnp.exp(s)
                p = p * pl.reciprocal(jnp.sum(p, axis=-1, keepdims=True), approx=True)
                attn = mm(p, v)
                xs[m] = mm(attn, wo_ref[p_i]) + bo_ref[p_i]              # (N_m, DIM) f32
                # For the 2-D '_target_table' branch torch keeps only column 0 of
                # this output; the matching SAGE weights are zero-padded below
                # row 0 at pack time, so the other columns are inert.

            # ---- HeteroConv of SAGEConvs, 'mean' aggregation per dst type ----
            # 1/num_incoming_edge_types and the lin_l bias are folded into the
            # packed weights; lin_r is pre-summed per dst type.  Accumulate in
            # place (one live accumulator per dst type).
            x_new = {}
            for m in node_types:
                if in_cnt[m] == 0:
                    continue
                ti = l * T + t_idx[m]
                x_new[m] = mm(xs[m], wrs_ref[ti]) + bs_ref[ti]           # summed lin_r + bias
            for ei, (src_t, _rel, dst_t) in enumerate(edge_types):
                c_i = l * E + ei
                msg = mm(xs[src_t], wl_ref[c_i])                         # scaled lin_l
                adj_e = adj_all[ei, :counts[dst_t], :counts[src_t]]      # row-normalized
                x_new[dst_t] = x_new[dst_t] + mm(adj_e, msg)
            for m in node_types:
                if m in x_new:
                    x[m] = x_new[m]
                # else: node type with no incoming edge type — the torch reference
                # would KeyError here; keep the previous features instead.

        # ---- out_lin (Linear with bias) + EXACT softmax over dim=1 ----
        logits = jnp.dot(x['_target_table'].astype(jnp.float32), ow_ref[...],
                         preferred_element_type=jnp.float32) + ob_ref[...]
        logits = logits - jnp.max(logits, axis=1, keepdims=True)
        p = jnp.exp(logits)
        o_ref[...] = p / jnp.sum(p, axis=1, keepdims=True)

    return kernel


# ----------------------------------------------------------------------------- glue
def dense_norm_adj(edge_index, n_src, n_dst):
    """Row-normalized dense adjacency via one-hot matmuls (no TPU scatter)."""
    src, dst = edge_index[0], edge_index[1]
    oh_dst = jax.nn.one_hot(dst, n_dst, dtype=jnp.float32)       # (E, n_dst)
    oh_src = jax.nn.one_hot(src, n_src, dtype=jnp.float32)       # (E, n_src)
    a = oh_dst.T @ oh_src                                        # edge counts (n_dst, n_src)
    deg = jnp.sum(a, axis=1, keepdims=True)
    return a / jnp.maximum(deg, 1.0)


def build_adjacency_stack(edge_index_dict, edge_types, num_nodes):
    """Stacked, zero-padded, row-normalized bf16 adjacencies.

    Built ONCE per (static) graph and passed into the jitted forward, so the
    adjacency construction is hoisted out of the per-step forward path.
    """
    n_max_pad = max(_pad_rows(n) for n in num_nodes.values())
    adjs = []
    for et in edge_types:
        s_t, _, d_t = et
        a = dense_norm_adj(edge_index_dict[et], num_nodes[s_t], num_nodes[d_t])
        adjs.append(jnp.pad(a, ((0, n_max_pad - a.shape[0]),
                                (0, n_max_pad - a.shape[1]))))
    return jnp.stack(adjs).astype(jnp.bfloat16)


def embed_table(value, p):
    """Embedder + the ones-prefix concat done in AttnDBGNN.forward.

    value: (N, 2); column 0 is a categorical index (stored as float), column 1
    is numeric.  Cat -> embedding lookup, Num -> Linear(1, dim).
    """
    cat_idx = value[:, 0].astype(jnp.int32)
    cat_emb = p['cat_table'][cat_idx]                                     # (N, DIM)
    num_emb = value[:, 1:2] * p['num_w'][None, :] + p['num_b'][None, :]   # (N, DIM)
    val = jnp.stack([cat_emb, num_emb], axis=1)                           # (N, 2, DIM)
    ones = jnp.ones((value.shape[0], 1, DIM), jnp.float32)
    return jnp.concatenate([ones, val], axis=1)                           # (N, 3, DIM)


def make_forward(node_types, edge_types, schema_tables, num_nodes):
    """AttnDBGNN.forward: plain-JAX glue + one fused pallas_call, jitted."""
    node_types = tuple(node_types)
    edge_types = tuple(edge_types)
    assert all(m == '_target_table' or m in schema_tables for m in node_types)

    T, E = len(node_types), len(edge_types)
    counts = {m: num_nodes[m] for m in node_types}
    offsets, off = {}, 0
    for m in node_types:
        offsets[m] = off
        off += _pad_rows(num_nodes[m])
    total_rows = off
    n_max_pad = max(_pad_rows(n) for n in counts.values())
    in_cnt = {m: sum(1 for et in edge_types if et[2] == m) for m in node_types}
    n_target = num_nodes['_target_table']

    kernel = _build_fused_kernel(node_types, edge_types, LAYERS,
                                 offsets, counts, in_cnt)

    # Explicit scoped-VMEM budget: padded operand footprint with ~2x headroom,
    # clamped to 64 MiB so the same config also fits v7x's per-TC VMEM.
    operand_shapes = [
        ((total_rows, DIM), jnp.bfloat16),
        ((E, n_max_pad, n_max_pad), jnp.bfloat16),
        ((LAYERS * T, DIM, QKV_LANES), jnp.bfloat16),
        ((LAYERS * T, 1, QKV_LANES), jnp.float32),
        ((LAYERS * T, DIM, DIM), jnp.bfloat16),
        ((LAYERS * T, 1, DIM), jnp.float32),
        ((LAYERS * E, DIM, DIM), jnp.bfloat16),
        ((LAYERS * T, DIM, DIM), jnp.bfloat16),
        ((LAYERS * T, 1, DIM), jnp.float32),
        ((DIM, OUT_CH), jnp.float32),
        ((1, OUT_CH), jnp.float32),
        ((n_target, OUT_CH), jnp.float32),
    ]
    total_bytes = sum(_vmem_bytes(s, d) for s, d in operand_shapes)
    vmem_limit = int(min(64 << 20, max(32 << 20, 2 * total_bytes + (4 << 20))))

    n_in = 11
    vmem_spec = pl.BlockSpec(memory_space=pltpu.MemorySpace.VMEM)

    def forward(packed, x_dict, adj_stack):
        # Only the column-0 slab of each per-table (N, C+1, DIM) tensor feeds the
        # attention/conv path (batch slab 0 of a batch_first=False MHA); by
        # construction that slab is the ones prefix.  '_target_table' is
        # torch.ones((N, proj_dim)) in the reference model — the supplied target
        # features are intentionally discarded, exactly as in torch.
        slabs = []
        for m in node_types:
            value = x_dict[m]
            n = counts[m]
            if m == '_target_table':
                slab = jnp.ones((n, DIM), jnp.float32)
            else:
                slab = embed_table(value, packed['embedder'][m])[:, 0, :]
            pad = _pad_rows(n) - n
            if pad:
                slab = jnp.pad(slab, ((0, pad), (0, 0)))
            slabs.append(slab)
        x_packed = jnp.concatenate(slabs, axis=0).astype(jnp.bfloat16)

        # TODO(synk): for large graphs, tile the per-type attention over KV blocks
        # (online softmax) and the neighbor aggregation over dst rows with a grid
        # (axis marked "parallel" to engage v7x's 2nd TensorCore), and replace the
        # dense padded adjacency with CSR + PrefetchScalarGridSpec gather — the
        # O(N^2) score / adjacency tiles hit v7x's 64 MiB VMEM first.
        args = (x_packed, adj_stack,
                packed['attn_wqkv'], packed['attn_bqkv'],
                packed['attn_wo'], packed['attn_bo'],
                packed['conv_wl'], packed['conv_wr_sum'], packed['conv_b_sum'],
                packed['out_w'], packed['out_b'])
        return pl.pallas_call(
            kernel,
            out_shape=jax.ShapeDtypeStruct((n_target, OUT_CH), jnp.float32),
            in_specs=[vmem_spec] * n_in,
            out_specs=vmem_spec,
            compiler_params=pltpu.CompilerParams(vmem_limit_bytes=vmem_limit),
        )(*args)

    return jax.jit(forward)


# ----------------------------------------------------------------------------- params
def init_params(key, node_types, edge_types, schema_tables):
    keys = iter(jax.random.split(key, 512))

    def nrm(shape, scale=0.1):
        return scale * jax.random.normal(next(keys), shape, dtype=jnp.float32)

    def feat_dim(nt):                 # xs[nt] feature width entering HeteroConv
        return 1 if nt == '_target_table' else DIM

    params = {'embedder': {}, 'layers': [], 'out_lin': {}}
    for t in schema_tables:
        params['embedder'][t] = {'cat_table': nrm((VOCAB, DIM)),
                                 'num_w': nrm((DIM,)), 'num_b': nrm((DIM,))}
    for _ in range(LAYERS):
        layer = {'attn': {}, 'conv': {}}
        for m in node_types:          # MultiheadAttention(proj_dim, 1) per node type
            layer['attn'][m] = {
                'wq': nrm((DIM, DIM)), 'wk': nrm((DIM, DIM)), 'wv': nrm((DIM, DIM)),
                'wo': nrm((DIM, DIM)),
                'bq': nrm((1, DIM)), 'bk': nrm((1, DIM)), 'bv': nrm((1, DIM)),
                'bo': nrm((1, DIM)),
            }
        for et in edge_types:         # SAGEConv(-1, proj_dim) per edge type
            s, _, d = et
            layer['conv'][et] = {'wl': nrm((feat_dim(s), DIM)),   # lin_l (has bias)
                                 'bl': nrm((1, DIM)),
                                 'wr': nrm((feat_dim(d), DIM))}   # lin_r (no bias)
        params['layers'].append(layer)
    params['out_lin'] = {'w': nrm((DIM, OUT_CH)), 'b': nrm((1, OUT_CH))}
    return params


def pack_params(params, node_types, edge_types):
    """Stack / fuse / pad parameters for the single fused kernel.

    - wq|wk|wv -> one (DIM, 128) weight (bq|bk|bv -> (1, 128)), zero-padded
      beyond lane 96; the 1/sqrt(d) attention scale is folded into the q block.
    - SAGE lin_l / lin_r weights are zero-padded on the input dim up to DIM so
      edges touching the 1-wide '_target_table' features use uniform math.
    - The HeteroConv 'mean' divisor (per dst type) and the lin_l bias are folded
      into the packed weights; lin_r is pre-summed per dst type.
    - MXU-facing weights are stored bf16; biases stay f32.
    """
    scale = 1.0 / math.sqrt(DIM)
    in_cnt = {m: sum(1 for et in edge_types if et[2] == m) for m in node_types}

    def pad_rows(w):
        return jnp.zeros((DIM, DIM), jnp.float32).at[:w.shape[0], :].set(w)

    zpad_w = jnp.zeros((DIM, QKV_LANES - 3 * DIM), jnp.float32)
    zpad_b = jnp.zeros((1, QKV_LANES - 3 * DIM), jnp.float32)

    wqkv, bqkv, wo, bo = [], [], [], []
    wl, wr_sum, b_sum = [], [], []
    for lp in params['layers']:
        for m in node_types:
            a = lp['attn'][m]
            wqkv.append(jnp.concatenate([a['wq'] * scale, a['wk'], a['wv'], zpad_w], axis=1))
            bqkv.append(jnp.concatenate([a['bq'] * scale, a['bk'], a['bv'], zpad_b], axis=1))
            wo.append(a['wo'])
            bo.append(a['bo'])
        for m in node_types:          # pre-summed, mean-folded lin_r + bias per dst type
            wr_acc = jnp.zeros((DIM, DIM), jnp.float32)
            b_acc = jnp.zeros((1, DIM), jnp.float32)
            if in_cnt[m]:
                inv = 1.0 / in_cnt[m]
                for et in edge_types:
                    if et[2] != m:
                        continue
                    c = lp['conv'][et]
                    wr_acc = wr_acc + inv * pad_rows(c['wr'])
                    b_acc = b_acc + inv * c['bl']
            wr_sum.append(wr_acc)
            b_sum.append(b_acc)
        for et in edge_types:         # mean-folded lin_l per edge type
            c = lp['conv'][et]
            wl.append(pad_rows(c['wl']) * (1.0 / in_cnt[et[2]]))
    return {
        'embedder': params['embedder'],
        'attn_wqkv': jnp.stack(wqkv).astype(jnp.bfloat16),     # (L*T, DIM, 128)
        'attn_bqkv': jnp.stack(bqkv),                          # (L*T, 1, 128)  f32
        'attn_wo': jnp.stack(wo).astype(jnp.bfloat16),         # (L*T, DIM, DIM)
        'attn_bo': jnp.stack(bo),                              # (L*T, 1, DIM)  f32
        'conv_wl': jnp.stack(wl).astype(jnp.bfloat16),         # (L*E, DIM, DIM)
        'conv_wr_sum': jnp.stack(wr_sum).astype(jnp.bfloat16), # (L*T, DIM, DIM)
        'conv_b_sum': jnp.stack(b_sum),                        # (L*T, 1, DIM)  f32
        'out_w': params['out_lin']['w'],                       # (DIM, OUT_CH)  f32
        'out_b': params['out_lin']['b'],                       # (1, OUT_CH)    f32
    }


# ----------------------------------------------------------------------------- pure-JAX reference
def reference_forward(params, x_dict, edge_index_dict, node_types, edge_types, num_nodes):
    """Straightforward (un-fused, exact f32) re-implementation for checking."""
    scale = 1.0 / math.sqrt(DIM)
    x = {}
    for m in node_types:
        v = x_dict[m]
        if m == '_target_table':
            x[m] = jnp.ones((v.shape[0], DIM), jnp.float32)
        else:
            x[m] = embed_table(v, params['embedder'][m])[:, 0, :]
    adjs = {et: dense_norm_adj(edge_index_dict[et], num_nodes[et[0]], num_nodes[et[2]])
            for et in edge_types}
    for lp in params['layers']:
        xs = {}
        for m in node_types:
            a = lp['attn'][m]
            q = x[m] @ a['wq'] + a['bq']
            k = x[m] @ a['wk'] + a['bk']
            v = x[m] @ a['wv'] + a['bv']
            p = jax.nn.softmax((q * scale) @ k.T, axis=-1)
            out = (p @ v) @ a['wo'] + a['bo']
            xs[m] = out[:, 0:1] if m == '_target_table' else out
        outs = {m: [] for m in node_types}
        for et in edge_types:
            s_t, _, d_t = et
            c = lp['conv'][et]
            outs[d_t].append(adjs[et] @ (xs[s_t] @ c['wl']) + c['bl'] + xs[d_t] @ c['wr'])
        for m in node_types:
            if outs[m]:
                x[m] = sum(outs[m]) / len(outs[m])
    logits = x['_target_table'] @ params['out_lin']['w'] + params['out_lin']['b']
    return jax.nn.softmax(logits, axis=1)


# ----------------------------------------------------------------------------- main
if __name__ == "__main__":
    key = jax.random.PRNGKey(0)
    N_T, N_A, N_B = 8, 16, 16
    node_types = ('_target_table', 'table_a', 'table_b')
    edge_types = (('table_a', 'to', '_target_table'),
                  ('table_b', 'to', 'table_a'),
                  ('table_a', 'to', 'table_b'))
    num_nodes = {'_target_table': N_T, 'table_a': N_A, 'table_b': N_B}
    schema_tables = ('table_a', 'table_b')   # '_target_table' is not in the schema

    k_in, k_par, k_e = jax.random.split(key, 3)

    def make_table_value(k, n):
        k0, k1 = jax.random.split(k)
        cat = jax.random.randint(k0, (n, 1), 0, VOCAB).astype(jnp.float32)
        num = jax.random.normal(k1, (n, 1), dtype=jnp.float32)
        return jnp.concatenate([cat, num], axis=1)           # (n, 2)

    ka, kb, kt = jax.random.split(k_in, 3)
    x_dict = {
        '_target_table': jax.random.normal(kt, (N_T, DIM), dtype=jnp.float32),
        'table_a': make_table_value(ka, N_A),
        'table_b': make_table_value(kb, N_B),
    }

    edge_index_dict = {}
    for i, (s, r, d) in enumerate(edge_types):
        kk = jax.random.fold_in(k_e, i)
        k_s, k_d = jax.random.split(kk)
        n_edges = 24
        src = jax.random.randint(k_s, (n_edges,), 0, num_nodes[s])
        dst = jax.random.randint(k_d, (n_edges,), 0, num_nodes[d])
        edge_index_dict[(s, r, d)] = jnp.stack([src, dst])    # (2, E)

    params = init_params(k_par, node_types, edge_types, schema_tables)
    packed = pack_params(params, node_types, edge_types)

    # Adjacency is built ONCE per static graph (hoisted out of the forward).
    adj_stack = build_adjacency_stack(edge_index_dict, edge_types, num_nodes)

    forward = make_forward(node_types, edge_types, schema_tables, num_nodes)
    out = forward(packed, x_dict, adj_stack)
    out = jax.block_until_ready(out)

    ref = reference_forward(params, x_dict, edge_index_dict,
                            node_types, edge_types, num_nodes)

    assert out.shape == (N_T, OUT_CH), out.shape
    assert bool(jnp.all(jnp.isfinite(out)))
    # exact division in the head -> probabilities sum to 1 at f32 precision
    assert bool(jnp.allclose(jnp.sum(out, axis=1), 1.0, atol=1e-4))
    # bf16 MXU operands + approx-reciprocal attention softmaxes -> small slack
    assert bool(jnp.allclose(out, ref, atol=3e-2)), jnp.max(jnp.abs(out - ref))
    print("KERNEL_OK")
</pallas_src>

<mosaic_0001>
module attributes {stable_mosaic.version = 11 : i64} {
  func.func @kernel(%arg0: memref<48x32xbf16, #tpu.memory_space<vmem>>, %arg1: memref<3x16x16xbf16, #tpu.memory_space<vmem>>, %arg2: memref<6x32x128xbf16, #tpu.memory_space<vmem>>, %arg3: memref<6x1x128xf32, #tpu.memory_space<vmem>>, %arg4: memref<6x32x32xbf16, #tpu.memory_space<vmem>>, %arg5: memref<6x1x32xf32, #tpu.memory_space<vmem>>, %arg6: memref<6x32x32xbf16, #tpu.memory_space<vmem>>, %arg7: memref<6x32x32xbf16, #tpu.memory_space<vmem>>, %arg8: memref<6x1x32xf32, #tpu.memory_space<vmem>>, %arg9: memref<32x4xf32, #tpu.memory_space<vmem>>, %arg10: memref<1x4xf32, #tpu.memory_space<vmem>>, %arg11: memref<8x4xf32, #tpu.memory_space<vmem>>) attributes {dimension_semantics = [], scalar_prefetch = 0 : i64, scratch_operands = 0 : i64, tpu.core_type = #tpu.core_type<tc>} {
    %c0 = arith.constant 0 : index
    %c0_0 = arith.constant 0 : index
    %0 = vector.load %arg0[%c0, %c0_0] : memref<48x32xbf16, #tpu.memory_space<vmem>>, vector<48x32xbf16>
    %c0_1 = arith.constant 0 : index
    %c0_2 = arith.constant 0 : index
    %c0_3 = arith.constant 0 : index
    %1 = vector.load %arg1[%c0_1, %c0_2, %c0_3] : memref<3x16x16xbf16, #tpu.memory_space<vmem>>, vector<3x16x16xbf16>
    %2 = vector.extract_strided_slice %0 {offsets = [0, 0], sizes = [8, 32], strides = [1, 1]} : vector<48x32xbf16> to vector<8x32xbf16>
    %3 = vector.extract_strided_slice %0 {offsets = [16, 0], sizes = [16, 32], strides = [1, 1]} : vector<48x32xbf16> to vector<16x32xbf16>
    %4 = vector.extract_strided_slice %0 {offsets = [32, 0], sizes = [16, 32], strides = [1, 1]} : vector<48x32xbf16> to vector<16x32xbf16>
    %c0_4 = arith.constant 0 : index
    %c0_5 = arith.constant 0 : index
    %c0_6 = arith.constant 0 : index
    %5 = vector.load %arg2[%c0_4, %c0_5, %c0_6] : memref<6x32x128xbf16, #tpu.memory_space<vmem>>, vector<1x32x128xbf16>
    %6 = vector.shape_cast %5 : vector<1x32x128xbf16> to vector<32x128xbf16>
    %cst = arith.constant dense<0.000000e+00> : vector<8x128xf32>
    %7 = tpu.matmul %2, %6, %cst {dimension_numbers = #tpu.dot_dimension_numbers<[1], [0], [0], [1], [0, 0, 1, 1], [], []>} : vector<8x32xbf16>, vector<32x128xbf16>, vector<8x128xf32> -> vector<8x128xf32>
    %c0_7 = arith.constant 0 : index
    %c0_8 = arith.constant 0 : index
    %c0_9 = arith.constant 0 : index
    %8 = vector.load %arg3[%c0_7, %c0_8, %c0_9] : memref<6x1x128xf32, #tpu.memory_space<vmem>>, vector<1x1x128xf32>
    %9 = vector.shape_cast %8 : vector<1x1x128xf32> to vector<1x128xf32>
    %10 = vector.broadcast %9 : vector<1x128xf32> to vector<8x128xf32>
    %11 = arith.addf %7, %10 : vector<8x128xf32>
    %12 = vector.extract_strided_slice %11 {offsets = [0, 0], sizes = [8, 32], strides = [1, 1]} : vector<8x128xf32> to vector<8x32xf32>
    %13 = vector.extract_strided_slice %11 {offsets = [0, 32], sizes = [8, 32], strides = [1, 1]} : vector<8x128xf32> to vector<8x32xf32>
    %14 = vector.extract_strided_slice %11 {offsets = [0, 64], sizes = [8, 32], strides = [1, 1]} : vector<8x128xf32> to vector<8x32xf32>
    %15 = arith.truncf %12 : vector<8x32xf32> to vector<8x32xbf16>
    %16 = arith.truncf %13 : vector<8x32xf32> to vector<8x32xbf16>
    %cst_10 = arith.constant dense<0.000000e+00> : vector<8x8xf32>
    %17 = tpu.matmul %15, %16, %cst_10 {dimension_numbers = #tpu.dot_dimension_numbers<[1], [1], [0], [0], [0, 0, 1, 0], [], []>} : vector<8x32xbf16>, vector<8x32xbf16>, vector<8x8xf32> -> vector<8x8xf32>
    %cst_11 = arith.constant dense<0xFF800000> : vector<8xf32>
    %18 = vector.multi_reduction <maximumf>, %17, %cst_11 [1] : vector<8x8xf32> to vector<8xf32>
    %19 = vector.shape_cast %18 : vector<8xf32> to vector<8x1xf32>
    %20 = vector.broadcast %19 : vector<8x1xf32> to vector<8x8xf32>
    %21 = arith.subf %17, %20 : vector<8x8xf32>
    %22 = math.exp %21 : vector<8x8xf32>
    %cst_12 = arith.constant dense<0.000000e+00> : vector<8xf32>
    %23 = vector.multi_reduction <add>, %22, %cst_12 [1] : vector<8x8xf32> to vector<8xf32>
    %24 = vector.shape_cast %23 : vector<8xf32> to vector<8x1xf32>
    %25 = tpu.reciprocal %24 {approx = true} : vector<8x1xf32> -> vector<8x1xf32>
    %26 = vector.broadcast %25 : vector<8x1xf32> to vector<8x8xf32>
    %27 = arith.mulf %22, %26 : vector<8x8xf32>
    %28 = arith.truncf %27 : vector<8x8xf32> to vector<8x8xbf16>
    %29 = arith.truncf %14 : vector<8x32xf32> to vector<8x32xbf16>
    %cst_13 = arith.constant dense<0.000000e+00> : vector<8x32xf32>
    %30 = tpu.matmul %28, %29, %cst_13 {dimension_numbers = #tpu.dot_dimension_numbers<[1], [0], [0], [1], [0, 0, 1, 1], [], []>} : vector<8x8xbf16>, vector<8x32xbf16>, vector<8x32xf32> -> vector<8x32xf32>
    %c0_14 = arith.constant 0 : index
    %c0_15 = arith.constant 0 : index
    %c0_16 = arith.constant 0 : index
    %31 = vector.load %arg4[%c0_14, %c0_15, %c0_16] : memref<6x32x32xbf16, #tpu.memory_space<vmem>>, vector<1x32x32xbf16>
    %32 = vector.shape_cast %31 : vector<1x32x32xbf16> to vector<32x32xbf16>
    %33 = arith.truncf %30 : vector<8x32xf32> to vector<8x32xbf16>
    %cst_17 = arith.constant dense<0.000000e+00> : vector<8x32xf32>
    %34 = tpu.matmul %33, %32, %cst_17 {dimension_numbers = #tpu.dot_dimension_numbers<[1], [0], [0], [1], [0, 0, 1, 1], [], []>} : vector<8x32xbf16>, vector<32x32xbf16>, vector<8x32xf32> -> vector<8x32xf32>
    %c0_18 = arith.constant 0 : index
    %c0_19 = arith.constant 0 : index
    %c0_20 = arith.constant 0 : index
    %35 = vector.load %arg5[%c0_18, %c0_19, %c0_20] : memref<6x1x32xf32, #tpu.memory_space<vmem>>, vector<1x1x32xf32>
    %36 = vector.shape_cast %35 : vector<1x1x32xf32> to vector<1x32xf32>
    %37 = vector.broadcast %36 : vector<1x32xf32> to vector<8x32xf32>
    %38 = arith.addf %34, %37 : vector<8x32xf32>
    %c1 = arith.constant 1 : index
    %c0_21 = arith.constant 0 : index
    %c0_22 = arith.constant 0 : index
    %39 = vector.load %arg2[%c1, %c0_21, %c0_22] : memref<6x32x128xbf16, #tpu.memory_space<vmem>>, vector<1x32x128xbf16>
    %40 = vector.shape_cast %39 : vector<1x32x128xbf16> to vector<32x128xbf16>
    %cst_23 = arith.constant dense<0.000000e+00> : vector<16x128xf32>
    %41 = tpu.matmul %3, %40, %cst_23 {dimension_numbers = #tpu.dot_dimension_numbers<[1], [0], [0], [1], [0, 0, 1, 1], [], []>} : vector<16x32xbf16>, vector<32x128xbf16>, vector<16x128xf32> -> vector<16x128xf32>
    %c1_24 = arith.constant 1 : index
    %c0_25 = arith.constant 0 : index
    %c0_26 = arith.constant 0 : index
    %42 = vector.load %arg3[%c1_24, %c0_25, %c0_26] : memref<6x1x128xf32, #tpu.memory_space<vmem>>, vector<1x1x128xf32>
    %43 = vector.shape_cast %42 : vector<1x1x128xf32> to vector<1x128xf32>
    %44 = vector.broadcast %43 : vector<1x128xf32> to vector<16x128xf32>
    %45 = arith.addf %41, %44 : vector<16x128xf32>
    %46 = vector.extract_strided_slice %45 {offsets = [0, 0], sizes = [16, 32], strides = [1, 1]} : vector<16x128xf32> to vector<16x32xf32>
    %47 = vector.extract_strided_slice %45 {offsets = [0, 32], sizes = [16, 32], strides = [1, 1]} : vector<16x128xf32> to vector<16x32xf32>
    %48 = vector.extract_strided_slice %45 {offsets = [0, 64], sizes = [16, 32], strides = [1, 1]} : vector<16x128xf32> to vector<16x32xf32>
    %49 = arith.truncf %46 : vector<16x32xf32> to vector<16x32xbf16>
    %50 = arith.truncf %47 : vector<16x32xf32> to vector<16x32xbf16>
    %cst_27 = arith.constant dense<0.000000e+00> : vector<16x16xf32>
    %51 = tpu.matmul %49, %50, %cst_27 {dimension_numbers = #tpu.dot_dimension_numbers<[1], [1], [0], [0], [0, 0, 1, 0], [], []>} : vector<16x32xbf16>, vector<16x32xbf16>, vector<16x16xf32> -> vector<16x16xf32>
    %cst_28 = arith.constant dense<0xFF800000> : vector<16xf32>
    %52 = vector.multi_reduction <maximumf>, %51, %cst_28 [1] : vector<16x16xf32> to vector<16xf32>
    %53 = vector.shape_cast %52 : vector<16xf32> to vector<16x1xf32>
    %54 = vector.broadcast %53 : vector<16x1xf32> to vector<16x16xf32>
    %55 = arith.subf %51, %54 : vector<16x16xf32>
    %56 = math.exp %55 : vector<16x16xf32>
    %cst_29 = arith.constant dense<0.000000e+00> : vector<16xf32>
    %57 = vector.multi_reduction <add>, %56, %cst_29 [1] : vector<16x16xf32> to vector<16xf32>
    %58 = vector.shape_cast %57 : vector<16xf32> to vector<16x1xf32>
    %59 = tpu.reciprocal %58 {approx = true} : vector<16x1xf32> -> vector<16x1xf32>
    %60 = vector.broadcast %59 : vector<16x1xf32> to vector<16x16xf32>
    %61 = arith.mulf %56, %60 : vector<16x16xf32>
    %62 = arith.truncf %61 : vector<16x16xf32> to vector<16x16xbf16>
    %63 = arith.truncf %48 : vector<16x32xf32> to vector<16x32xbf16>
    %cst_30 = arith.constant dense<0.000000e+00> : vector<16x32xf32>
    %64 = tpu.matmul %62, %63, %cst_30 {dimension_numbers = #tpu.dot_dimension_numbers<[1], [0], [0], [1], [0, 0, 1, 1], [], []>} : vector<16x16xbf16>, vector<16x32xbf16>, vector<16x32xf32> -> vector<16x32xf32>
    %c1_31 = arith.constant 1 : index
    %c0_32 = arith.constant 0 : index
    %c0_33 = arith.constant 0 : index
    %65 = vector.load %arg4[%c1_31, %c0_32, %c0_33] : memref<6x32x32xbf16, #tpu.memory_space<vmem>>, vector<1x32x32xbf16>
    %66 = vector.shape_cast %65 : vector<1x32x32xbf16> to vector<32x32xbf16>
    %67 = arith.truncf %64 : vector<16x32xf32> to vector<16x32xbf16>
    %cst_34 = arith.constant dense<0.000000e+00> : vector<16x32xf32>
    %68 = tpu.matmul %67, %66, %cst_34 {dimension_numbers = #tpu.dot_dimension_numbers<[1], [0], [0], [1], [0, 0, 1, 1], [], []>} : vector<16x32xbf16>, vector<32x32xbf16>, vector<16x32xf32> -> vector<16x32xf32>
    %c1_35 = arith.constant 1 : index
    %c0_36 = arith.constant 0 : index
    %c0_37 = arith.constant 0 : index
    %69 = vector.load %arg5[%c1_35, %c0_36, %c0_37] : memref<6x1x32xf32, #tpu.memory_space<vmem>>, vector<1x1x32xf32>
    %70 = vector.shape_cast %69 : vector<1x1x32xf32> to vector<1x32xf32>
    %71 = vector.broadcast %70 : vector<1x32xf32> to vector<16x32xf32>
    %72 = arith.addf %68, %71 : vector<16x32xf32>
    %c2 = arith.constant 2 : index
    %c0_38 = arith.constant 0 : index
    %c0_39 = arith.constant 0 : index
    %73 = vector.load %arg2[%c2, %c0_38, %c0_39] : memref<6x32x128xbf16, #tpu.memory_space<vmem>>, vector<1x32x128xbf16>
    %74 = vector.shape_cast %73 : vector<1x32x128xbf16> to vector<32x128xbf16>
    %cst_40 = arith.constant dense<0.000000e+00> : vector<16x128xf32>
    %75 = tpu.matmul %4, %74, %cst_40 {dimension_numbers = #tpu.dot_dimension_numbers<[1], [0], [0], [1], [0, 0, 1, 1], [], []>} : vector<16x32xbf16>, vector<32x128xbf16>, vector<16x128xf32> -> vector<16x128xf32>
    %c2_41 = arith.constant 2 : index
    %c0_42 = arith.constant 0 : index
    %c0_43 = arith.constant 0 : index
    %76 = vector.load %arg3[%c2_41, %c0_42, %c0_43] : memref<6x1x128xf32, #tpu.memory_space<vmem>>, vector<1x1x128xf32>
    %77 = vector.shape_cast %76 : vector<1x1x128xf32> to vector<1x128xf32>
    %78 = vector.broadcast %77 : vector<1x128xf32> to vector<16x128xf32>
    %79 = arith.addf %75, %78 : vector<16x128xf32>
    %80 = vector.extract_strided_slice %79 {offsets = [0, 0], sizes = [16, 32], strides = [1, 1]} : vector<16x128xf32> to vector<16x32xf32>
    %81 = vector.extract_strided_slice %79 {offsets = [0, 32], sizes = [16, 32], strides = [1, 1]} : vector<16x128xf32> to vector<16x32xf32>
    %82 = vector.extract_strided_slice %79 {offsets = [0, 64], sizes = [16, 32], strides = [1, 1]} : vector<16x128xf32> to vector<16x32xf32>
    %83 = arith.truncf %80 : vector<16x32xf32> to vector<16x32xbf16>
    %84 = arith.truncf %81 : vector<16x32xf32> to vector<16x32xbf16>
    %cst_44 = arith.constant dense<0.000000e+00> : vector<16x16xf32>
    %85 = tpu.matmul %83, %84, %cst_44 {dimension_numbers = #tpu.dot_dimension_numbers<[1], [1], [0], [0], [0, 0, 1, 0], [], []>} : vector<16x32xbf16>, vector<16x32xbf16>, vector<16x16xf32> -> vector<16x16xf32>
    %cst_45 = arith.constant dense<0xFF800000> : vector<16xf32>
    %86 = vector.multi_reduction <maximumf>, %85, %cst_45 [1] : vector<16x16xf32> to vector<16xf32>
    %87 = vector.shape_cast %86 : vector<16xf32> to vector<16x1xf32>
    %88 = vector.broadcast %87 : vector<16x1xf32> to vector<16x16xf32>
    %89 = arith.subf %85, %88 : vector<16x16xf32>
    %90 = math.exp %89 : vector<16x16xf32>
    %cst_46 = arith.constant dense<0.000000e+00> : vector<16xf32>
    %91 = vector.multi_reduction <add>, %90, %cst_46 [1] : vector<16x16xf32> to vector<16xf32>
    %92 = vector.shape_cast %91 : vector<16xf32> to vector<16x1xf32>
    %93 = tpu.reciprocal %92 {approx = true} : vector<16x1xf32> -> vector<16x1xf32>
    %94 = vector.broadcast %93 : vector<16x1xf32> to vector<16x16xf32>
    %95 = arith.mulf %90, %94 : vector<16x16xf32>
    %96 = arith.truncf %95 : vector<16x16xf32> to vector<16x16xbf16>
    %97 = arith.truncf %82 : vector<16x32xf32> to vector<16x32xbf16>
    %cst_47 = arith.constant dense<0.000000e+00> : vector<16x32xf32>
    %98 = tpu.matmul %96, %97, %cst_47 {dimension_numbers = #tpu.dot_dimension_numbers<[1], [0], [0], [1], [0, 0, 1, 1], [], []>} : vector<16x16xbf16>, vector<16x32xbf16>, vector<16x32xf32> -> vector<16x32xf32>
    %c2_48 = arith.constant 2 : index
    %c0_49 = arith.constant 0 : index
    %c0_50 = arith.constant 0 : index
    %99 = vector.load %arg4[%c2_48, %c0_49, %c0_50] : memref<6x32x32xbf16, #tpu.memory_space<vmem>>, vector<1x32x32xbf16>
    %100 = vector.shape_cast %99 : vector<1x32x32xbf16> to vector<32x32xbf16>
    %101 = arith.truncf %98 : vector<16x32xf32> to vector<16x32xbf16>
    %cst_51 = arith.constant dense<0.000000e+00> : vector<16x32xf32>
    %102 = tpu.matmul %101, %100, %cst_51 {dimension_numbers = #tpu.dot_dimension_numbers<[1], [0], [0], [1], [0, 0, 1, 1], [], []>} : vector<16x32xbf16>, vector<32x32xbf16>, vector<16x32xf32> -> vector<16x32xf32>
    %c2_52 = arith.constant 2 : index
    %c0_53 = arith.constant 0 : index
    %c0_54 = arith.constant 0 : index
    %103 = vector.load %arg5[%c2_52, %c0_53, %c0_54] : memref<6x1x32xf32, #tpu.memory_space<vmem>>, vector<1x1x32xf32>
    %104 = vector.shape_cast %103 : vector<1x1x32xf32> to vector<1x32xf32>
    %105 = vector.broadcast %104 : vector<1x32xf32> to vector<16x32xf32>
    %106 = arith.addf %102, %105 : vector<16x32xf32>
    %c0_55 = arith.constant 0 : index
    %c0_56 = arith.constant 0 : index
    %c0_57 = arith.constant 0 : index
    %107 = vector.load %arg7[%c0_55, %c0_56, %c0_57] : memref<6x32x32xbf16, #tpu.memory_space<vmem>>, vector<1x32x32xbf16>
    %108 = vector.shape_cast %107 : vector<1x32x32xbf16> to vector<32x32xbf16>
    %109 = arith.truncf %38 : vector<8x32xf32> to vector<8x32xbf16>
    %cst_58 = arith.constant dense<0.000000e+00> : vector<8x32xf32>
    %110 = tpu.matmul %109, %108, %cst_58 {dimension_numbers = #tpu.dot_dimension_numbers<[1], [0], [0], [1], [0, 0, 1, 1], [], []>} : vector<8x32xbf16>, vector<32x32xbf16>, vector<8x32xf32> -> vector<8x32xf32>
    %c0_59 = arith.constant 0 : index
    %c0_60 = arith.constant 0 : index
    %c0_61 = arith.constant 0 : index
    %111 = vector.load %arg8[%c0_59, %c0_60, %c0_61] : memref<6x1x32xf32, #tpu.memory_space<vmem>>, vector<1x1x32xf32>
    %112 = vector.shape_cast %111 : vector<1x1x32xf32> to vector<1x32xf32>
    %113 = vector.broadcast %112 : vector<1x32xf32> to vector<8x32xf32>
    %114 = arith.addf %110, %113 : vector<8x32xf32>
    %c1_62 = arith.constant 1 : index
    %c0_63 = arith.constant 0 : index
    %c0_64 = arith.constant 0 : index
    %115 = vector.load %arg7[%c1_62, %c0_63, %c0_64] : memref<6x32x32xbf16, #tpu.memory_space<vmem>>, vector<1x32x32xbf16>
    %116 = vector.shape_cast %115 : vector<1x32x32xbf16> to vector<32x32xbf16>
    %117 = arith.truncf %72 : vector<16x32xf32> to vector<16x32xbf16>
    %cst_65 = arith.constant dense<0.000000e+00> : vector<16x32xf32>
    %118 = tpu.matmul %117, %116, %cst_65 {dimension_numbers = #tpu.dot_dimension_numbers<[1], [0], [0], [1], [0, 0, 1, 1], [], []>} : vector<16x32xbf16>, vector<32x32xbf16>, vector<16x32xf32> -> vector<16x32xf32>
    %c1_66 = arith.constant 1 : index
    %c0_67 = arith.constant 0 : index
    %c0_68 = arith.constant 0 : index
    %119 = vector.load %arg8[%c1_66, %c0_67, %c0_68] : memref<6x1x32xf32, #tpu.memory_space<vmem>>, vector<1x1x32xf32>
    %120 = vector.shape_cast %119 : vector<1x1x32xf32> to vector<1x32xf32>
    %121 = vector.broadcast %120 : vector<1x32xf32> to vector<16x32xf32>
    %122 = arith.addf %118, %121 : vector<16x32xf32>
    %c0_69 = arith.constant 0 : index
    %c0_70 = arith.constant 0 : index
    %c0_71 = arith.constant 0 : index
    %123 = vector.load %arg6[%c0_69, %c0_70, %c0_71] : memref<6x32x32xbf16, #tpu.memory_space<vmem>>, vector<1x32x32xbf16>
    %124 = vector.shape_cast %123 : vector<1x32x32xbf16> to vector<32x32xbf16>
    %125 = arith.truncf %72 : vector<16x32xf32> to vector<16x32xbf16>
    %cst_72 = arith.constant dense<0.000000e+00> : vector<16x32xf32>
    %126 = tpu.matmul %125, %124, %cst_72 {dimension_numbers = #tpu.dot_dimension_numbers<[1], [0], [0], [1], [0, 0, 1, 1], [], []>} : vector<16x32xbf16>, vector<32x32xbf16>, vector<16x32xf32> -> vector<16x32xf32>
    %127 = vector.extract_strided_slice %1 {offsets = [0, 0, 0], sizes = [1, 8, 16], strides = [1, 1, 1]} : vector<3x16x16xbf16> to vector<1x8x16xbf16>
    %128 = vector.shape_cast %127 : vector<1x8x16xbf16> to vector<8x16xbf16>
    %129 = arith.truncf %126 : vector<16x32xf32> to vector<16x32xbf16>
    %cst_73 = arith.constant dense<0.000000e+00> : vector<8x32xf32>
    %130 = tpu.matmul %128, %129, %cst_73 {dimension_numbers = #tpu.dot_dimension_numbers<[1], [0], [0], [1], [0, 0, 1, 1], [], []>} : vector<8x16xbf16>, vector<16x32xbf16>, vector<8x32xf32> -> vector<8x32xf32>
    %131 = arith.addf %114, %130 : vector<8x32xf32>
    %c1_74 = arith.constant 1 : index
    %c0_75 = arith.constant 0 : index
    %c0_76 = arith.constant 0 : index
    %132 = vector.load %arg6[%c1_74, %c0_75, %c0_76] : memref<6x32x32xbf16, #tpu.memory_space<vmem>>, vector<1x32x32xbf16>
    %133 = vector.shape_cast %132 : vector<1x32x32xbf16> to vector<32x32xbf16>
    %134 = arith.truncf %106 : vector<16x32xf32> to vector<16x32xbf16>
    %cst_77 = arith.constant dense<0.000000e+00> : vector<16x32xf32>
    %135 = tpu.matmul %134, %133, %cst_77 {dimension_numbers = #tpu.dot_dimension_numbers<[1], [0], [0], [1], [0, 0, 1, 1], [], []>} : vector<16x32xbf16>, vector<32x32xbf16>, vector<16x32xf32> -> vector<16x32xf32>
    %136 = vector.extract_strided_slice %1 {offsets = [1, 0, 0], sizes = [1, 16, 16], strides = [1, 1, 1]} : vector<3x16x16xbf16> to vector<1x16x16xbf16>
    %137 = vector.shape_cast %136 : vector<1x16x16xbf16> to vector<16x16xbf16>
    %138 = arith.truncf %135 : vector<16x32xf32> to vector<16x32xbf16>
    %cst_78 = arith.constant dense<0.000000e+00> : vector<16x32xf32>
    %139 = tpu.matmul %137, %138, %cst_78 {dimension_numbers = #tpu.dot_dimension_numbers<[1], [0], [0], [1], [0, 0, 1, 1], [], []>} : vector<16x16xbf16>, vector<16x32xbf16>, vector<16x32xf32> -> vector<16x32xf32>
    %140 = arith.addf %122, %139 : vector<16x32xf32>
    %c3 = arith.constant 3 : index
    %c0_79 = arith.constant 0 : index
    %c0_80 = arith.constant 0 : index
    %141 = vector.load %arg2[%c3, %c0_79, %c0_80] : memref<6x32x128xbf16, #tpu.memory_space<vmem>>, vector<1x32x128xbf16>
    %142 = vector.shape_cast %141 : vector<1x32x128xbf16> to vector<32x128xbf16>
    %143 = arith.truncf %131 : vector<8x32xf32> to vector<8x32xbf16>
    %cst_81 = arith.constant dense<0.000000e+00> : vector<8x128xf32>
    %144 = tpu.matmul %143, %142, %cst_81 {dimension_numbers = #tpu.dot_dimension_numbers<[1], [0], [0], [1], [0, 0, 1, 1], [], []>} : vector<8x32xbf16>, vector<32x128xbf16>, vector<8x128xf32> -> vector<8x128xf32>
    %c3_82 = arith.constant 3 : index
    %c0_83 = arith.constant 0 : index
    %c0_84 = arith.constant 0 : index
    %145 = vector.load %arg3[%c3_82, %c0_83, %c0_84] : memref<6x1x128xf32, #tpu.memory_space<vmem>>, vector<1x1x128xf32>
    %146 = vector.shape_cast %145 : vector<1x1x128xf32> to vector<1x128xf32>
    %147 = vector.broadcast %146 : vector<1x128xf32> to vector<8x128xf32>
    %148 = arith.addf %144, %147 : vector<8x128xf32>
    %149 = vector.extract_strided_slice %148 {offsets = [0, 0], sizes = [8, 32], strides = [1, 1]} : vector<8x128xf32> to vector<8x32xf32>
    %150 = vector.extract_strided_slice %148 {offsets = [0, 32], sizes = [8, 32], strides = [1, 1]} : vector<8x128xf32> to vector<8x32xf32>
    %151 = vector.extract_strided_slice %148 {offsets = [0, 64], sizes = [8, 32], strides = [1, 1]} : vector<8x128xf32> to vector<8x32xf32>
    %152 = arith.truncf %149 : vector<8x32xf32> to vector<8x32xbf16>
    %153 = arith.truncf %150 : vector<8x32xf32> to vector<8x32xbf16>
    %cst_85 = arith.constant dense<0.000000e+00> : vector<8x8xf32>
    %154 = tpu.matmul %152, %153, %cst_85 {dimension_numbers = #tpu.dot_dimension_numbers<[1], [1], [0], [0], [0, 0, 1, 0], [], []>} : vector<8x32xbf16>, vector<8x32xbf16>, vector<8x8xf32> -> vector<8x8xf32>
    %cst_86 = arith.constant dense<0xFF800000> : vector<8xf32>
    %155 = vector.multi_reduction <maximumf>, %154, %cst_86 [1] : vector<8x8xf32> to vector<8xf32>
    %156 = vector.shape_cast %155 : vector<8xf32> to vector<8x1xf32>
    %157 = vector.broadcast %156 : vector<8x1xf32> to vector<8x8xf32>
    %158 = arith.subf %154, %157 : vector<8x8xf32>
    %159 = math.exp %158 : vector<8x8xf32>
    %cst_87 = arith.constant dense<0.000000e+00> : vector<8xf32>
    %160 = vector.multi_reduction <add>, %159, %cst_87 [1] : vector<8x8xf32> to vector<8xf32>
    %161 = vector.shape_cast %160 : vector<8xf32> to vector<8x1xf32>
    %162 = tpu.reciprocal %161 {approx = true} : vector<8x1xf32> -> vector<8x1xf32>
    %163 = vector.broadcast %162 : vector<8x1xf32> to vector<8x8xf32>
    %164 = arith.mulf %159, %163 : vector<8x8xf32>
    %165 = arith.truncf %164 : vector<8x8xf32> to vector<8x8xbf16>
    %166 = arith.truncf %151 : vector<8x32xf32> to vector<8x32xbf16>
    %cst_88 = arith.constant dense<0.000000e+00> : vector<8x32xf32>
    %167 = tpu.matmul %165, %166, %cst_88 {dimension_numbers = #tpu.dot_dimension_numbers<[1], [0], [0], [1], [0, 0, 1, 1], [], []>} : vector<8x8xbf16>, vector<8x32xbf16>, vector<8x32xf32> -> vector<8x32xf32>
    %c3_89 = arith.constant 3 : index
    %c0_90 = arith.constant 0 : index
    %c0_91 = arith.constant 0 : index
    %168 = vector.load %arg4[%c3_89, %c0_90, %c0_91] : memref<6x32x32xbf16, #tpu.memory_space<vmem>>, vector<1x32x32xbf16>
    %169 = vector.shape_cast %168 : vector<1x32x32xbf16> to vector<32x32xbf16>
    %170 = arith.truncf %167 : vector<8x32xf32> to vector<8x32xbf16>
    %cst_92 = arith.constant dense<0.000000e+00> : vector<8x32xf32>
    %171 = tpu.matmul %170, %169, %cst_92 {dimension_numbers = #tpu.dot_dimension_numbers<[1], [0], [0], [1], [0, 0, 1, 1], [], []>} : vector<8x32xbf16>, vector<32x32xbf16>, vector<8x32xf32> -> vector<8x32xf32>
    %c3_93 = arith.constant 3 : index
    %c0_94 = arith.constant 0 : index
    %c0_95 = arith.constant 0 : index
    %172 = vector.load %arg5[%c3_93, %c0_94, %c0_95] : memref<6x1x32xf32, #tpu.memory_space<vmem>>, vector<1x1x32xf32>
    %173 = vector.shape_cast %172 : vector<1x1x32xf32> to vector<1x32xf32>
    %174 = vector.broadcast %173 : vector<1x32xf32> to vector<8x32xf32>
    %175 = arith.addf %171, %174 : vector<8x32xf32>
    %c4 = arith.constant 4 : index
    %c0_96 = arith.constant 0 : index
    %c0_97 = arith.constant 0 : index
    %176 = vector.load %arg2[%c4, %c0_96, %c0_97] : memref<6x32x128xbf16, #tpu.memory_space<vmem>>, vector<1x32x128xbf16>
    %177 = vector.shape_cast %176 : vector<1x32x128xbf16> to vector<32x128xbf16>
    %178 = arith.truncf %140 : vector<16x32xf32> to vector<16x32xbf16>
    %cst_98 = arith.constant dense<0.000000e+00> : vector<16x128xf32>
    %179 = tpu.matmul %178, %177, %cst_98 {dimension_numbers = #tpu.dot_dimension_numbers<[1], [0], [0], [1], [0, 0, 1, 1], [], []>} : vector<16x32xbf16>, vector<32x128xbf16>, vector<16x128xf32> -> vector<16x128xf32>
    %c4_99 = arith.constant 4 : index
    %c0_100 = arith.constant 0 : index
    %c0_101 = arith.constant 0 : index
    %180 = vector.load %arg3[%c4_99, %c0_100, %c0_101] : memref<6x1x128xf32, #tpu.memory_space<vmem>>, vector<1x1x128xf32>
    %181 = vector.shape_cast %180 : vector<1x1x128xf32> to vector<1x128xf32>
    %182 = vector.broadcast %181 : vector<1x128xf32> to vector<16x128xf32>
    %183 = arith.addf %179, %182 : vector<16x128xf32>
    %184 = vector.extract_strided_slice %183 {offsets = [0, 0], sizes = [16, 32], strides = [1, 1]} : vector<16x128xf32> to vector<16x32xf32>
    %185 = vector.extract_strided_slice %183 {offsets = [0, 32], sizes = [16, 32], strides = [1, 1]} : vector<16x128xf32> to vector<16x32xf32>
    %186 = vector.extract_strided_slice %183 {offsets = [0, 64], sizes = [16, 32], strides = [1, 1]} : vector<16x128xf32> to vector<16x32xf32>
    %187 = arith.truncf %184 : vector<16x32xf32> to vector<16x32xbf16>
    %188 = arith.truncf %185 : vector<16x32xf32> to vector<16x32xbf16>
    %cst_102 = arith.constant dense<0.000000e+00> : vector<16x16xf32>
    %189 = tpu.matmul %187, %188, %cst_102 {dimension_numbers = #tpu.dot_dimension_numbers<[1], [1], [0], [0], [0, 0, 1, 0], [], []>} : vector<16x32xbf16>, vector<16x32xbf16>, vector<16x16xf32> -> vector<16x16xf32>
    %cst_103 = arith.constant dense<0xFF800000> : vector<16xf32>
    %190 = vector.multi_reduction <maximumf>, %189, %cst_103 [1] : vector<16x16xf32> to vector<16xf32>
    %191 = vector.shape_cast %190 : vector<16xf32> to vector<16x1xf32>
    %192 = vector.broadcast %191 : vector<16x1xf32> to vector<16x16xf32>
    %193 = arith.subf %189, %192 : vector<16x16xf32>
    %194 = math.exp %193 : vector<16x16xf32>
    %cst_104 = arith.constant dense<0.000000e+00> : vector<16xf32>
    %195 = vector.multi_reduction <add>, %194, %cst_104 [1] : vector<16x16xf32> to vector<16xf32>
    %196 = vector.shape_cast %195 : vector<16xf32> to vector<16x1xf32>
    %197 = tpu.reciprocal %196 {approx = true} : vector<16x1xf32> -> vector<16x1xf32>
    %198 = vector.broadcast %197 : vector<16x1xf32> to vector<16x16xf32>
    %199 = arith.mulf %194, %198 : vector<16x16xf32>
    %200 = arith.truncf %199 : vector<16x16xf32> to vector<16x16xbf16>
    %201 = arith.truncf %186 : vector<16x32xf32> to vector<16x32xbf16>
    %cst_105 = arith.constant dense<0.000000e+00> : vector<16x32xf32>
    %202 = tpu.matmul %200, %201, %cst_105 {dimension_numbers = #tpu.dot_dimension_numbers<[1], [0], [0], [1], [0, 0, 1, 1], [], []>} : vector<16x16xbf16>, vector<16x32xbf16>, vector<16x32xf32> -> vector<16x32xf32>
    %c4_106 = arith.constant 4 : index
    %c0_107 = arith.constant 0 : index
    %c0_108 = arith.constant 0 : index
    %203 = vector.load %arg4[%c4_106, %c0_107, %c0_108] : memref<6x32x32xbf16, #tpu.memory_space<vmem>>, vector<1x32x32xbf16>
    %204 = vector.shape_cast %203 : vector<1x32x32xbf16> to vector<32x32xbf16>
    %205 = arith.truncf %202 : vector<16x32xf32> to vector<16x32xbf16>
    %cst_109 = arith.constant dense<0.000000e+00> : vector<16x32xf32>
    %206 = tpu.matmul %205, %204, %cst_109 {dimension_numbers = #tpu.dot_dimension_numbers<[1], [0], [0], [1], [0, 0, 1, 1], [], []>} : vector<16x32xbf16>, vector<32x32xbf16>, vector<16x32xf32> -> vector<16x32xf32>
    %c4_110 = arith.constant 4 : index
    %c0_111 = arith.constant 0 : index
    %c0_112 = arith.constant 0 : index
    %207 = vector.load %arg5[%c4_110, %c0_111, %c0_112] : memref<6x1x32xf32, #tpu.memory_space<vmem>>, vector<1x1x32xf32>
    %208 = vector.shape_cast %207 : vector<1x1x32xf32> to vector<1x32xf32>
    %209 = vector.broadcast %208 : vector<1x32xf32> to vector<16x32xf32>
    %210 = arith.addf %206, %209 : vector<16x32xf32>
    %c3_113 = arith.constant 3 : index
    %c0_114 = arith.constant 0 : index
    %c0_115 = arith.constant 0 : index
    %211 = vector.load %arg7[%c3_113, %c0_114, %c0_115] : memref<6x32x32xbf16, #tpu.memory_space<vmem>>, vector<1x32x32xbf16>
    %212 = vector.shape_cast %211 : vector<1x32x32xbf16> to vector<32x32xbf16>
    %213 = arith.truncf %175 : vector<8x32xf32> to vector<8x32xbf16>
    %cst_116 = arith.constant dense<0.000000e+00> : vector<8x32xf32>
    %214 = tpu.matmul %213, %212, %cst_116 {dimension_numbers = #tpu.dot_dimension_numbers<[1], [0], [0], [1], [0, 0, 1, 1], [], []>} : vector<8x32xbf16>, vector<32x32xbf16>, vector<8x32xf32> -> vector<8x32xf32>
    %c3_117 = arith.constant 3 : index
    %c0_118 = arith.constant 0 : index
    %c0_119 = arith.constant 0 : index
    %215 = vector.load %arg8[%c3_117, %c0_118, %c0_119] : memref<6x1x32xf32, #tpu.memory_space<vmem>>, vector<1x1x32xf32>
    %216 = vector.shape_cast %215 : vector<1x1x32xf32> to vector<1x32xf32>
    %217 = vector.broadcast %216 : vector<1x32xf32> to vector<8x32xf32>
    %218 = arith.addf %214, %217 : vector<8x32xf32>
    %c3_120 = arith.constant 3 : index
    %c0_121 = arith.constant 0 : index
    %c0_122 = arith.constant 0 : index
    %219 = vector.load %arg6[%c3_120, %c0_121, %c0_122] : memref<6x32x32xbf16, #tpu.memory_space<vmem>>, vector<1x32x32xbf16>
    %220 = vector.shape_cast %219 : vector<1x32x32xbf16> to vector<32x32xbf16>
    %221 = arith.truncf %210 : vector<16x32xf32> to vector<16x32xbf16>
    %cst_123 = arith.constant dense<0.000000e+00> : vector<16x32xf32>
    %222 = tpu.matmul %221, %220, %cst_123 {dimension_numbers = #tpu.dot_dimension_numbers<[1], [0], [0], [1], [0, 0, 1, 1], [], []>} : vector<16x32xbf16>, vector<32x32xbf16>, vector<16x32xf32> -> vector<16x32xf32>
    %223 = vector.extract_strided_slice %1 {offsets = [0, 0, 0], sizes = [1, 8, 16], strides = [1, 1, 1]} : vector<3x16x16xbf16> to vector<1x8x16xbf16>
    %224 = vector.shape_cast %223 : vector<1x8x16xbf16> to vector<8x16xbf16>
    %225 = arith.truncf %222 : vector<16x32xf32> to vector<16x32xbf16>
    %cst_124 = arith.constant dense<0.000000e+00> : vector<8x32xf32>
    %226 = tpu.matmul %224, %225, %cst_124 {dimension_numbers = #tpu.dot_dimension_numbers<[1], [0], [0], [1], [0, 0, 1, 1], [], []>} : vector<8x16xbf16>, vector<16x32xbf16>, vector<8x32xf32> -> vector<8x32xf32>
    %227 = arith.addf %218, %226 : vector<8x32xf32>
    %c0_125 = arith.constant 0 : index
    %c0_126 = arith.constant 0 : index
    %228 = vector.load %arg9[%c0_125, %c0_126] : memref<32x4xf32, #tpu.memory_space<vmem>>, vector<32x4xf32>
    %cst_127 = arith.constant dense<0.000000e+00> : vector<8x4xf32>
    %229 = tpu.matmul %227, %228, %cst_127 {dimension_numbers = #tpu.dot_dimension_numbers<[1], [0], [0], [1], [0, 0, 1, 1], [], []>} : vector<8x32xf32>, vector<32x4xf32>, vector<8x4xf32> -> vector<8x4xf32>
    %c0_128 = arith.constant 0 : index
    %c0_129 = arith.constant 0 : index
    %230 = vector.load %arg10[%c0_128, %c0_129] : memref<1x4xf32, #tpu.memory_space<vmem>>, vector<1x4xf32>
    %231 = vector.broadcast %230 : vector<1x4xf32> to vector<8x4xf32>
    %232 = arith.addf %229, %231 : vector<8x4xf32>
    %cst_130 = arith.constant dense<0xFF800000> : vector<8xf32>
    %233 = vector.multi_reduction <maximumf>, %232, %cst_130 [1] : vector<8x4xf32> to vector<8xf32>
    %234 = vector.shape_cast %233 : vector<8xf32> to vector<8x1xf32>
    %235 = vector.broadcast %234 : vector<8x1xf32> to vector<8x4xf32>
    %236 = arith.subf %232, %235 : vector<8x4xf32>
    %237 = math.exp %236 : vector<8x4xf32>
    %cst_131 = arith.constant dense<0.000000e+00> : vector<8xf32>
    %238 = vector.multi_reduction <add>, %237, %cst_131 [1] : vector<8x4xf32> to vector<8xf32>
    %239 = vector.shape_cast %238 : vector<8xf32> to vector<8x1xf32>
    %240 = vector.broadcast %239 : vector<8x1xf32> to vector<8x4xf32>
    %241 = arith.divf %237, %240 : vector<8x4xf32>
    %c0_132 = arith.constant 0 : index
    %c0_133 = arith.constant 0 : index
    %242 = vector.load %arg11[%c0_132, %c0_133] : memref<8x4xf32, #tpu.memory_space<vmem>>, vector<8x4xf32>
    tpu.vector_store %arg11[%c0_132, %c0_133], %241 {strides = array<i32>} : memref<8x4xf32, #tpu.memory_space<vmem>>, vector<8x4xf32>,
    return
  }
}

</mosaic_0001>

<llo_original>
// kernel: forward.1
$region0: #{forward.1}
  #allocation0 [shape = 'u32[]', space=smem, size = 0x4, offset = 0x4, fixed_abs, tag = 'smem constant byte address 0x4 - core index']
  #allocation1 [shape = 'u32[144,128]{1,0:T(1,128)}', space=vmem, size = 0x12000, scoped, tag = 'internal scratch']
  %s0 = inlined_call_operand.vmem [shape: bf16[48,32], index: 0, kind: input, shape index: {}]
  %s1 = inlined_call_operand.vmem [shape: bf16[3,16,16], index: 1, kind: input, shape index: {}]
  %s2 = inlined_call_operand.vmem [shape: bf16[6,32,128], index: 2, kind: input, shape index: {}]
  %s3 = inlined_call_operand.hbm [shape: f32[6,1,128], index: 3, kind: input, shape index: {}]
  %s4 = inlined_call_operand.hbm [shape: bf16[6,32,32], index: 4, kind: input, shape index: {}]
  %s5 = inlined_call_operand.hbm [shape: f32[6,1,32], index: 5, kind: input, shape index: {}]
  %s6 = inlined_call_operand.hbm [shape: bf16[6,32,32], index: 6, kind: input, shape index: {}]
  %s7 = inlined_call_operand.hbm [shape: bf16[6,32,32], index: 7, kind: input, shape index: {}]
  %s8 = inlined_call_operand.hbm [shape: f32[6,1,32], index: 8, kind: input, shape index: {}]
  %s9 = inlined_call_operand.vmem [shape: f32[32,4], index: 9, kind: input, shape index: {}]
  %s10 = inlined_call_operand.vmem [shape: f32[1,4], index: 10, kind: input, shape index: {}]
  %s11 = inlined_call_operand.vmem [shape: f32[8,4], index: 11, kind: output, shape index: {}]
  %s12 = sld [smem:[#allocation0]]
  $region78: #{forward.1} parent=0
    _
  %s14 = ssub.s32 1, %s12
  %s15 = scalar_select 0, %s14, %s12
  $region1: #{forward.1} parent=0
    #allocation2 [shape = 'u8[3072]{0}', space=vmem, size = 0xc00, scoped, tag = 'input window, operand 3, single buffered']
    #allocation3 [shape = 's32[1]{0}', space=sflag, size = 0x4, scoped, tag = 'scoped memory for forward.1']
    #allocation4 [shape = 'u8[49152]{0}', space=vmem, size = 0xc000, scoped, tag = 'input window, operand 4, single buffered']
    #allocation5 [shape = 's32[1]{0}', space=sflag, size = 0x4, scoped, tag = 'scoped memory for forward.1']
    #allocation6 [shape = 'u8[3072]{0}', space=vmem, size = 0xc00, scoped, tag = 'input window, operand 5, single buffered']
    #allocation7 [shape = 'u8[49152]{0}', space=vmem, size = 0xc000, scoped, tag = 'input window, operand 6, single buffered']
    #allocation8 [shape = 's32[1]{0}', space=sflag, size = 0x4, scoped, tag = 'scoped memory for forward.1']
    #allocation9 [shape = 'u8[49152]{0}', space=vmem, size = 0xc000, scoped, tag = 'input window, operand 7, single buffered']
    #allocation10 [shape = 'u8[3072]{0}', space=vmem, size = 0xc00, scoped, tag = 'input window, operand 8, single buffered']
    #allocation11 [shape = 's32[1]{0}', space=sflag, size = 0x4, scoped, tag = 'scoped memory for forward.1']
    %16 = vsyncpa [#allocation3], 0
    %17 = vsyncpa [#allocation5], 0
    %18 = vsyncpa [#allocation8], 0
    %19 = vsyncpa [#allocation11], 0
    // Predicated region
    $region2: #{forward.1} parent=1 // pred_check
      _
    $region3: #{forward.1} parent=1 // pred_check_branch
      %21 = sbr.rel (0) target = $region5
    $region4: #{forward.1} parent=1 // pred_region
      _
    $region5: #{forward.1} parent=1 // pred_fallthru
      _
    // Predicated region
    $region6: #{forward.1} parent=1 // pred_check
      _
    $region7: #{forward.1} parent=1 // pred_check_branch
      %23 = sbr.rel (0) target = $region9
    $region8: #{forward.1} parent=1 // pred_region
      _
    $region9: #{forward.1} parent=1 // pred_fallthru
      _
    // Predicated region
    $region10: #{forward.1} parent=1 // pred_check
      _
    $region11: #{forward.1} parent=1 // pred_check_branch
      %25 = sbr.rel (0) target = $region13
    $region12: #{forward.1} parent=1 // pred_region
      _
    $region13: #{forward.1} parent=1 // pred_fallthru
      _
    // Predicated region
    $region14: #{forward.1} parent=1 // pred_check
      _
    $region15: #{forward.1} parent=1 // pred_check_branch
      %27 = sbr.rel (0) target = $region17
    $region16: #{forward.1} parent=1 // pred_region
      %s29 = ssub.s32 96, 96
      %30 = vsyncadd [#allocation3], %s29
      %s31 = sshll.u32 [#allocation2], 4
      %s32 = int_to_ptr.vmem [resolvable:$true] %s31
      %37 = dma.hbm_to_vmem [thread:$0]  %s3, 96, %s32, [#allocation3], 16, 16, 1
    $region17: #{forward.1} parent=1 // pred_fallthru
      _
    // Predicated region
    $region18: #{forward.1} parent=1 // pred_check
      _
    $region19: #{forward.1} parent=1 // pred_check_branch
      %39 = sbr.rel (0) target = $region21
    $region20: #{forward.1} parent=1 // pred_region
      %s41 = ssub.s32 1536, 1536
      %42 = vsyncadd [#allocation5], %s41
      %s43 = sshll.u32 [#allocation4], 4
      %s44 = int_to_ptr.vmem [resolvable:$true] %s43
      %49 = dma.hbm_to_vmem [thread:$0]  %s4, 1536, %s44, [#allocation5], 64, 64, 4
    $region21: #{forward.1} parent=1 // pred_fallthru
      _
    // Predicated region
    $region22: #{forward.1} parent=1 // pred_check
      _
    $region23: #{forward.1} parent=1 // pred_check_branch
      %51 = sbr.rel (0) target = $region25
    $region24: #{forward.1} parent=1 // pred_region
      %s53 = ssub.s32 96, 96
      %54 = vsyncadd [#allocation5], %s53
      %s55 = sshll.u32 [#allocation6], 4
      %s56 = int_to_ptr.vmem [resolvable:$true] %s55
      %61 = dma.hbm_to_vmem [thread:$0]  %s5, 96, %s56, [#allocation5], 16, 16, 1
    $region25: #{forward.1} parent=1 // pred_fallthru
      _
    // Predicated region
    $region26: #{forward.1} parent=1 // pred_check
      _
    $region27: #{forward.1} parent=1 // pred_check_branch
      %63 = sbr.rel (0) target = $region29
    $region28: #{forward.1} parent=1 // pred_region
      %s65 = ssub.s32 1536, 1536
      %66 = vsyncadd [#allocation8], %s65
      %s67 = sshll.u32 [#allocation7], 4
      %s68 = int_to_ptr.vmem [resolvable:$true] %s67
      %73 = dma.hbm_to_vmem [thread:$0]  %s6, 1536, %s68, [#allocation8], 64, 64, 4
    $region29: #{forward.1} parent=1 // pred_fallthru
      _
    // Predicated region
    $region30: #{forward.1} parent=1 // pred_check
      _
    $region31: #{forward.1} parent=1 // pred_check_branch
      %75 = sbr.rel (0) target = $region33
    $region32: #{forward.1} parent=1 // pred_region
      %s77 = ssub.s32 1536, 1536
      %78 = vsyncadd [#allocation8], %s77
      %s79 = sshll.u32 [#allocation9], 4
      %s80 = int_to_ptr.vmem [resolvable:$true] %s79
      %85 = dma.hbm_to_vmem [thread:$0]  %s7, 1536, %s80, [#allocation8], 64, 64, 4
    $region33: #{forward.1} parent=1 // pred_fallthru
      _
    // Predicated region
    $region34: #{forward.1} parent=1 // pred_check
      _
    $region35: #{forward.1} parent=1 // pred_check_branch
      %87 = sbr.rel (0) target = $region37
    $region36: #{forward.1} parent=1 // pred_region
      %s89 = ssub.s32 96, 96
      %90 = vsyncadd [#allocation11], %s89
      %s91 = sshll.u32 [#allocation10], 4
      %s92 = int_to_ptr.vmem [resolvable:$true] %s91
      %97 = dma.hbm_to_vmem [thread:$0]  %s8, 96, %s92, [#allocation11], 16, 16, 1
    $region37: #{forward.1} parent=1 // pred_fallthru
      _
    // Predicated region
    $region38: #{forward.1} parent=1 // pred_check
      _
    $region39: #{forward.1} parent=1 // pred_check_branch
      %99 = sbr.rel (0) target = $region41
    $region40: #{forward.1} parent=1 // pred_region
      _
    $region41: #{forward.1} parent=1 // pred_fallthru
      _
    // Predicated region
    $region42: #{forward.1} parent=1 // pred_check
      _
    $region43: #{forward.1} parent=1 // pred_check_branch
      %101 = sbr.rel (0) target = $region45
    $region44: #{forward.1} parent=1 // pred_region
      _
    $region45: #{forward.1} parent=1 // pred_fallthru
      _
    // Predicated region
    $region46: #{forward.1} parent=1 // pred_check
      _
    $region47: #{forward.1} parent=1 // pred_check_branch
      %103 = sbr.rel (0) target = $region49
    $region48: #{forward.1} parent=1 // pred_region
      %104 = dma.done [#allocation3], 96
    $region49: #{forward.1} parent=1 // pred_fallthru
      _
    // Predicated region
    $region50: #{forward.1} parent=1 // pred_check
      _
    $region51: #{forward.1} parent=1 // pred_check_branch
      %106 = sbr.rel (0) target = $region53
    $region52: #{forward.1} parent=1 // pred_region
      %107 = dma.done [#allocation5], 1536
    $region53: #{forward.1} parent=1 // pred_fallthru
      _
    // Predicated region
    $region54: #{forward.1} parent=1 // pred_check
      _
    $region55: #{forward.1} parent=1 // pred_check_branch
      %109 = sbr.rel (0) target = $region57
    $region56: #{forward.1} parent=1 // pred_region
      %110 = dma.done [#allocation5], 96
    $region57: #{forward.1} parent=1 // pred_fallthru
      _
    // Predicated region
    $region58: #{forward.1} parent=1 // pred_check
      _
    $region59: #{forward.1} parent=1 // pred_check_branch
      %112 = sbr.rel (0) target = $region61
    $region60: #{forward.1} parent=1 // pred_region
      %113 = dma.done [#allocation8], 1536
    $region61: #{forward.1} parent=1 // pred_fallthru
      _
    // Predicated region
    $region62: #{forward.1} parent=1 // pred_check
      _
    $region63: #{forward.1} parent=1 // pred_check_branch
      %115 = sbr.rel (0) target = $region65
    $region64: #{forward.1} parent=1 // pred_region
      %116 = dma.done [#allocation8], 1536
    $region65: #{forward.1} parent=1 // pred_fallthru
      _
    // Predicated region
    $region66: #{forward.1} parent=1 // pred_check
      _
    $region67: #{forward.1} parent=1 // pred_check_branch
      %118 = sbr.rel (0) target = $region69
    $region68: #{forward.1} parent=1 // pred_region
      %119 = dma.done [#allocation11], 96
    $region69: #{forward.1} parent=1 // pred_fallthru
      _
    %v121 = vld [vmem:[%s0] sm:$0xf]
    %v122 = vld [vmem:[%s0 + $0x8] sm:$0xf]
    %v123 = vld [vmem:[%s0 + $0xc] sm:$0xf]
    %v124 = vld [vmem:[%s0 + $0x10] sm:$0xf]
    %v125 = vld [vmem:[%s0 + $0x14] sm:$0xf]
    %v126 = vld [vmem:[%s1] sm:$0xf]
    %v127 = vld [vmem:[%s1 + $0x8] sm:$0xf]
    %v128 = vld [vmem:[%s1 + $0xc] sm:$0xf]
    %v129 = vld [vmem:[%s2] sm:$0xf]
    %v130 = vld [vmem:[%s2 + $0x4] sm:$0xf]
    %v131 = vld [vmem:[%s2 + $0x8] sm:$0xf]
    %v132 = vld [vmem:[%s2 + $0xc] sm:$0xf]
    %v133 = vld [vmem:[#allocation2] sm:$0x1]
    %v135 = vlaneseq
    %v136 = vshrl.u32 %v135, 7
    %v137 = vsub.s32 0, %v136
    %v138 = vrot.slane %v133, %v137
    %v144 = vunpack.c.l.b16 %v129
    %v145 = vunpack.c.l.b16 %v130
    %v146 = vunpack.c.l.b16 %v131
    %v147 = vunpack.c.l.b16 %v132
    %v148 = vpack.c.b16 %v145, %v144
    %v149 = vpack.c.b16 %v147, %v146
    %vm152 = vcmask 261120
    %v154 = vsel %vm152, %v121, 0
    %156 = vmatprep.subr.bf16.mxu0 0
    %157 = vmatpush1.bf16.msra.mxu0 %v148
    %158 = vmatprep.subr.bf16.mxu0 0
    %159 = vmatpush1.bf16.msra.mxu0 %v149
    %160 = vmatprep.subr.bf16.mxu0 0
    %161 = vmatpush1.bf16.msra.mxu0 0
    %162 = vmatprep.subr.bf16.mxu0 0
    %163 = vmatpush1.bf16.msra.mxu0 0
    %164 = vmatprep.subr.bf16.mxu0 0
    %165 = vmatpush1.bf16.msra.mxu0 0
    %166 = vmatprep.subr.bf16.mxu0 0
    %167 = vmatpush1.bf16.msra.mxu0 0
    %168 = vmatprep.subr.bf16.mxu0 0
    %169 = vmatpush1.bf16.msra.mxu0 0
    %170 = vmatprep.subr.bf16.mxu0 0
    %171 = vmatpush1.bf16.msra.mxu0 0
    %172 = vmatprep.subr.bf16.mxu0 0
    %173 = vmatpush1.bf16.msra.mxu0 0
    %174 = vmatprep.subr.bf16.mxu0 0
    %175 = vmatpush1.bf16.msra.mxu0 0
    %176 = vmatprep.subr.bf16.mxu0 0
    %177 = vmatpush1.bf16.msra.mxu0 0
    %178 = vmatprep.subr.bf16.mxu0 0
    %179 = vmatpush1.bf16.msra.mxu0 0
    %180 = vmatprep.subr.bf16.mxu0 0
    %181 = vmatpush1.bf16.msra.mxu0 0
    %182 = vmatprep.subr.bf16.mxu0 0
    %183 = vmatpush1.bf16.msra.mxu0 0
    %184 = vmatprep.subr.bf16.mxu0 0
    %185 = vmatpush1.bf16.msra.mxu0 0
    %186 = vmatprep.subr.bf16.mxu0 0
    %187 = vmatpush1.bf16.msra.mxu0 0
    %188 = vmatprep.mubr.bf16.mxu0 0
    %189 = vmatmul.mubr.bf16.gmra.mrb[0].mxu0 %v154
    %v190 = vpop.f32.mrb[0].mxu0
    %v191 = vadd.f32 %v138, %v190
    %v192 = vpop.f32.mrb[0].mxu0
    %v193 = vpop.f32.mrb[0].mxu0
    %v194 = vpop.f32.mrb[0].mxu0
    %195 = vdwg.mxu0
    %v196 = vpack.c.bf16 %v191, %v191
    %198 = vrot.lane.b32.xlu0 %v196, 96
    %v199 = vpop.permute.xlu0 %198
    %v201 = vsel %vm152, %v196, 0
    %v204 = vsel %vm152, %v199, 0
    %206 = vmatprep.subr.bf16.mxu0 0
    %207 = vmatpush1.bf16.xpose.msra.mxu0 %v204
    %208 = vmatprep.subr.bf16.mxu0 0
    %209 = vmatpush1.bf16.xpose.msra.mxu0 0
    %210 = vmatprep.subr.bf16.mxu0 0
    %211 = vmatpush1.bf16.xpose.msra.mxu0 0
    %212 = vmatprep.subr.bf16.mxu0 0
    %213 = vmatpush1.bf16.xpose.msra.mxu0 0
    %214 = vmatprep.subr.bf16.mxu0 0
    %215 = vmatpush1.bf16.xpose.msra.mxu0 0
    %216 = vmatprep.subr.bf16.mxu0 0
    %217 = vmatpush1.bf16.xpose.msra.mxu0 0
    %218 = vmatprep.subr.bf16.mxu0 0
    %219 = vmatpush1.bf16.xpose.msra.mxu0 0
    %220 = vmatprep.subr.bf16.mxu0 0
    %221 = vmatpush1.bf16.xpose.msra.mxu0 0
    %222 = vmatprep.subr.bf16.mxu0 0
    %223 = vmatpush1.bf16.xpose.msra.mxu0 0
    %224 = vmatprep.subr.bf16.mxu0 0
    %225 = vmatpush1.bf16.xpose.msra.mxu0 0
    %226 = vmatprep.subr.bf16.mxu0 0
    %227 = vmatpush1.bf16.xpose.msra.mxu0 0
    %228 = vmatprep.subr.bf16.mxu0 0
    %229 = vmatpush1.bf16.xpose.msra.mxu0 0
    %230 = vmatprep.subr.bf16.mxu0 0
    %231 = vmatpush1.bf16.xpose.msra.mxu0 0
    %232 = vmatprep.subr.bf16.mxu0 0
    %233 = vmatpush1.bf16.xpose.msra.mxu0 0
    %234 = vmatprep.subr.bf16.mxu0 0
    %235 = vmatpush1.bf16.xpose.msra.mxu0 0
    %236 = vmatprep.subr.bf16.mxu0 0
    %237 = vmatpush1.bf16.xpose.msra.mxu0 0
    %238 = vmatprep.mubr.bf16.mxu0 0
    %239 = vmatmul.mubr.bf16.gmra.mrb[0].mxu0 %v201
    %v240 = vpop.f32.mrb[0].mxu0
    %v241 = vadd.f32 0.0, %v240
    %v242 = vpop.f32.mrb[0].mxu0
    %v243 = vpop.f32.mrb[0].mxu0
    %v244 = vpop.f32.mrb[0].mxu0
    %245 = vdwg.mxu0
    %vm246 = vcmask 64512
    %v247 = vsel %vm246, %v241, -inf
    %248 = vmax.xlane.f32.xlu0 %v247
    %v249 = vpop.xlane.xlu0 %248
    %v250 = vsub.f32 %v241, %v249
    %v251 = vmul.f32 %v250, 1.442695
    %v252 = vpow.pop %v251
    %v253 = vsel %vm246, %v252, 0.0
    %254 = vadd.xlane.f32.xlu0 %v253
    %v255 = vpop.xlane.xlu0 %254
    %v256 = vrcp.pop %v255
    %v257 = vmul.f32 %v252, %v256
    %v258 = vpack.c.bf16 %v257, %v257
    %259 = vrot.lane.b32.xlu0 %v196, 64
    %v260 = vpop.permute.xlu0 %259
    %v262 = vsel %vm246, %v258, 0
    %vm264 = vcmask 1043456
    %v266 = vsel %vm264, %v260, 0
    %268 = vmatprep.subr.bf16.mxu0 0
    %269 = vmatpush1.bf16.msra.mxu0 %v266
    %270 = vmatprep.subr.bf16.mxu0 0
    %271 = vmatpush1.bf16.msra.mxu0 0
    %272 = vmatprep.subr.bf16.mxu0 0
    %273 = vmatpush1.bf16.msra.mxu0 0
    %274 = vmatprep.subr.bf16.mxu0 0
    %275 = vmatpush1.bf16.msra.mxu0 0
    %276 = vmatprep.subr.bf16.mxu0 0
    %277 = vmatpush1.bf16.msra.mxu0 0
    %278 = vmatprep.subr.bf16.mxu0 0
    %279 = vmatpush1.bf16.msra.mxu0 0
    %280 = vmatprep.subr.bf16.mxu0 0
    %281 = vmatpush1.bf16.msra.mxu0 0
    %282 = vmatprep.subr.bf16.mxu0 0
    %283 = vmatpush1.bf16.msra.mxu0 0
    %284 = vmatprep.subr.bf16.mxu0 0
    %285 = vmatpush1.bf16.msra.mxu0 0
    %286 = vmatprep.subr.bf16.mxu0 0
    %287 = vmatpush1.bf16.msra.mxu0 0
    %288 = vmatprep.subr.bf16.mxu0 0
    %289 = vmatpush1.bf16.msra.mxu0 0
    %290 = vmatprep.subr.bf16.mxu0 0
    %291 = vmatpush1.bf16.msra.mxu0 0
    %292 = vmatprep.subr.bf16.mxu0 0
    %293 = vmatpush1.bf16.msra.mxu0 0
    %294 = vmatprep.subr.bf16.mxu0 0
    %295 = vmatpush1.bf16.msra.mxu0 0
    %296 = vmatprep.subr.bf16.mxu0 0
    %297 = vmatpush1.bf16.msra.mxu0 0
    %298 = vmatprep.subr.bf16.mxu0 0
    %299 = vmatpush1.bf16.msra.mxu0 0
    %300 = vmatprep.mubr.bf16.mxu0 0
    %301 = vmatmul.mubr.bf16.gmra.mrb[0].mxu0 %v262
    %v302 = vpop.f32.mrb[0].mxu0
    %v303 = vadd.f32 0.0, %v302
    %v304 = vpop.f32.mrb[0].mxu0
    %v305 = vpop.f32.mrb[0].mxu0
    %v306 = vpop.f32.mrb[0].mxu0
    %307 = vdwg.mxu0
    %v308 = vld [vmem:[#allocation4] sm:$0xf]
    %v309 = vld [vmem:[#allocation4 + $0x4] sm:$0xf]
    %v310 = vld [vmem:[#allocation4 + $0x8] sm:$0xf]
    %v311 = vld [vmem:[#allocation4 + $0xc] sm:$0xf]
    %v312 = vpack.c.bf16 %v303, %v303
    %v313 = vld [vmem:[#allocation6] sm:$0x1]
    %v315 = vlaneseq
    %v316 = vshrl.u32 %v315, 7
    %v317 = vsub.s32 0, %v316
    %v318 = vrot.slane %v313, %v317
    %v324 = vunpack.c.l.b16 %v308
    %v325 = vunpack.c.l.b16 %v309
    %v326 = vunpack.c.l.b16 %v310
    %v327 = vunpack.c.l.b16 %v311
    %v328 = vpack.c.b16 %v325, %v324
    %v329 = vpack.c.b16 %v327, %v326
    %v333 = vsel %vm152, %v312, 0
    %335 = vmatprep.subr.bf16.mxu0 0
    %336 = vmatpush1.bf16.msra.mxu0 %v328
    %337 = vmatprep.subr.bf16.mxu0 0
    %338 = vmatpush1.bf16.msra.mxu0 %v329
    %339 = vmatprep.subr.bf16.mxu0 0
    %340 = vmatpush1.bf16.msra.mxu0 0
    %341 = vmatprep.subr.bf16.mxu0 0
    %342 = vmatpush1.bf16.msra.mxu0 0
    %343 = vmatprep.subr.bf16.mxu0 0
    %344 = vmatpush1.bf16.msra.mxu0 0
    %345 = vmatprep.subr.bf16.mxu0 0
    %346 = vmatpush1.bf16.msra.mxu0 0
    %347 = vmatprep.subr.bf16.mxu0 0
    %348 = vmatpush1.bf16.msra.mxu0 0
    %349 = vmatprep.subr.bf16.mxu0 0
    %350 = vmatpush1.bf16.msra.mxu0 0
    %351 = vmatprep.subr.bf16.mxu0 0
    %352 = vmatpush1.bf16.msra.mxu0 0
    %353 = vmatprep.subr.bf16.mxu0 0
    %354 = vmatpush1.bf16.msra.mxu0 0
    %355 = vmatprep.subr.bf16.mxu0 0
    %356 = vmatpush1.bf16.msra.mxu0 0
    %357 = vmatprep.subr.bf16.mxu0 0
    %358 = vmatpush1.bf16.msra.mxu0 0
    %359 = vmatprep.subr.bf16.mxu0 0
    %360 = vmatpush1.bf16.msra.mxu0 0
    %361 = vmatprep.subr.bf16.mxu0 0
    %362 = vmatpush1.bf16.msra.mxu0 0
    %363 = vmatprep.subr.bf16.mxu0 0
    %364 = vmatpush1.bf16.msra.mxu0 0
    %365 = vmatprep.subr.bf16.mxu0 0
    %366 = vmatpush1.bf16.msra.mxu0 0
    %367 = vmatprep.mubr.bf16.mxu0 0
    %368 = vmatmul.mubr.bf16.gmra.mrb[0].mxu0 %v333
    %v369 = vpop.f32.mrb[0].mxu0
    %v370 = vadd.f32 %v318, %v369
    %v371 = vpop.f32.mrb[0].mxu0
    %v372 = vpop.f32.mrb[0].mxu0
    %v373 = vpop.f32.mrb[0].mxu0
    %374 = vdwg.mxu0
    %s375 = scalar_lea.vmem %s2, 16
    %v376 = vld [vmem:[%s375] sm:$0xf]
    %v377 = vld [vmem:[%s375 + $0x4] sm:$0xf]
    %v378 = vld [vmem:[%s375 + $0x8] sm:$0xf]
    %v379 = vld [vmem:[%s375 + $0xc] sm:$0xf]
    %s380 = scalar_lea.vmem [#allocation2], 1
    %v381 = vld [vmem:[%s380] sm:$0x1]
    %v383 = vlaneseq
    %v384 = vshrl.u32 %v383, 7
    %v385 = vsub.s32 0, %v384
    %v386 = vrot.slane %v381, %v385
    %v390 = vunpack.c.l.b16 %v122
    %v391 = vunpack.c.l.b16 %v123
    %v392 = vpack.c.b16 %v391, %v390
    %v397 = vunpack.c.l.b16 %v376
    %v398 = vunpack.c.l.b16 %v377
    %v399 = vunpack.c.l.b16 %v378
    %v400 = vunpack.c.l.b16 %v379
    %v401 = vpack.c.b16 %v398, %v397
    %v402 = vpack.c.b16 %v400, %v399
    %v406 = vsel %vm152, %v392, 0
    %408 = vmatprep.subr.bf16.mxu0 0
    %409 = vmatpush1.bf16.msra.mxu0 %v401
    %410 = vmatprep.subr.bf16.mxu0 0
    %411 = vmatpush1.bf16.msra.mxu0 %v402
    %412 = vmatprep.subr.bf16.mxu0 0
    %413 = vmatpush1.bf16.msra.mxu0 0
    %414 = vmatprep.subr.bf16.mxu0 0
    %415 = vmatpush1.bf16.msra.mxu0 0
    %416 = vmatprep.subr.bf16.mxu0 0
    %417 = vmatpush1.bf16.msra.mxu0 0
    %418 = vmatprep.subr.bf16.mxu0 0
    %419 = vmatpush1.bf16.msra.mxu0 0
    %420 = vmatprep.subr.bf16.mxu0 0
    %421 = vmatpush1.bf16.msra.mxu0 0
    %422 = vmatprep.subr.bf16.mxu0 0
    %423 = vmatpush1.bf16.msra.mxu0 0
    %424 = vmatprep.subr.bf16.mxu0 0
    %425 = vmatpush1.bf16.msra.mxu0 0
    %426 = vmatprep.subr.bf16.mxu0 0
    %427 = vmatpush1.bf16.msra.mxu0 0
    %428 = vmatprep.subr.bf16.mxu0 0
    %429 = vmatpush1.bf16.msra.mxu0 0
    %430 = vmatprep.subr.bf16.mxu0 0
    %431 = vmatpush1.bf16.msra.mxu0 0
    %432 = vmatprep.subr.bf16.mxu0 0
    %433 = vmatpush1.bf16.msra.mxu0 0
    %434 = vmatprep.subr.bf16.mxu0 0
    %435 = vmatpush1.bf16.msra.mxu0 0
    %436 = vmatprep.subr.bf16.mxu0 0
    %437 = vmatpush1.bf16.msra.mxu0 0
    %438 = vmatprep.subr.bf16.mxu0 0
    %439 = vmatpush1.bf16.msra.mxu0 0
    %440 = vmatprep.mubr.bf16.mxu0 0
    %441 = vmatmul.mubr.bf16.gmra.mrb[0].mxu0 %v406
    %v442 = vpop.f32.mrb[0].mxu0
    %v443 = vadd.f32 %v386, %v442
    %v444 = vpop.f32.mrb[0].mxu0
    %v445 = vpop.f32.mrb[0].mxu0
    %v446 = vadd.f32 %v386, %v445
    %v447 = vpop.f32.mrb[0].mxu0
    %448 = vdwg.mxu0
    %v449 = vpack.c.bf16 %v446, %v443
    %451 = vrot.lane.b32.xlu0 %v449, 96
    %v452 = vpop.permute.xlu0 %451
    %v454 = vsel %vm152, %v449, 0
    %v457 = vsel %vm152, %v452, 0
    %459 = vmatprep.subr.bf16.mxu0 0
    %460 = vmatpush1.bf16.xpose.msra.mxu0 %v457
    %461 = vmatprep.subr.bf16.mxu0 0
    %462 = vmatpush1.bf16.xpose.msra.mxu0 0
    %463 = vmatprep.subr.bf16.mxu0 0
    %464 = vmatpush1.bf16.xpose.msra.mxu0 0
    %465 = vmatprep.subr.bf16.mxu0 0
    %466 = vmatpush1.bf16.xpose.msra.mxu0 0
    %467 = vmatprep.subr.bf16.mxu0 0
    %468 = vmatpush1.bf16.xpose.msra.mxu0 0
    %469 = vmatprep.subr.bf16.mxu0 0
    %470 = vmatpush1.bf16.xpose.msra.mxu0 0
    %471 = vmatprep.subr.bf16.mxu0 0
    %472 = vmatpush1.bf16.xpose.msra.mxu0 0
    %473 = vmatprep.subr.bf16.mxu0 0
    %474 = vmatpush1.bf16.xpose.msra.mxu0 0
    %475 = vmatprep.subr.bf16.mxu0 0
    %476 = vmatpush1.bf16.xpose.msra.mxu0 0
    %477 = vmatprep.subr.bf16.mxu0 0
    %478 = vmatpush1.bf16.xpose.msra.mxu0 0
    %479 = vmatprep.subr.bf16.mxu0 0
    %480 = vmatpush1.bf16.xpose.msra.mxu0 0
    %481 = vmatprep.subr.bf16.mxu0 0
    %482 = vmatpush1.bf16.xpose.msra.mxu0 0
    %483 = vmatprep.subr.bf16.mxu0 0
    %484 = vmatpush1.bf16.xpose.msra.mxu0 0
    %485 = vmatprep.subr.bf16.mxu0 0
    %486 = vmatpush1.bf16.xpose.msra.mxu0 0
    %487 = vmatprep.subr.bf16.mxu0 0
    %488 = vmatpush1.bf16.xpose.msra.mxu0 0
    %489 = vmatprep.subr.bf16.mxu0 0
    %490 = vmatpush1.bf16.xpose.msra.mxu0 0
    %491 = vmatprep.mubr.bf16.mxu0 0
    %492 = vmatmul.mubr.bf16.gmra.mrb[0].mxu0 %v454
    %v493 = vpop.f32.mrb[0].mxu0
    %v494 = vadd.f32 0.0, %v493
    %v495 = vpop.f32.mrb[0].mxu0
    %v496 = vpop.f32.mrb[0].mxu0
    %v497 = vadd.f32 0.0, %v496
    %v498 = vpop.f32.mrb[0].mxu0
    %499 = vdwg.mxu0
    %vm500 = vcmask 130048
    %v501 = vsel %vm500, %v494, -inf
    %502 = vmax.xlane.f32.xlu0 %v501
    %v503 = vpop.xlane.xlu0 %502
    %v504 = vsel %vm500, %v497, -inf
    %505 = vmax.xlane.f32.xlu0 %v504
    %v506 = vpop.xlane.xlu0 %505
    %v507 = vsub.f32 %v494, %v503
    %v508 = vsub.f32 %v497, %v506
    %v509 = vmul.f32 %v507, 1.442695
    %v510 = vpow.pop %v509
    %v511 = vmul.f32 %v508, 1.442695
    %v512 = vpow.pop %v511
    %v513 = vsel %vm500, %v510, 0.0
    %514 = vadd.xlane.f32.xlu0 %v513
    %v515 = vpop.xlane.xlu0 %514
    %v516 = vsel %vm500, %v512, 0.0
    %517 = vadd.xlane.f32.xlu0 %v516
    %v518 = vpop.xlane.xlu0 %517
    %v519 = vrcp.pop %v515
    %v520 = vrcp.pop %v518
    %v521 = vmul.f32 %v510, %v519
    %v522 = vmul.f32 %v512, %v520
    %v523 = vpack.c.bf16 %v522, %v521
    %524 = vrot.lane.b32.xlu0 %v449, 64
    %v525 = vpop.permute.xlu0 %524
    %v528 = vsel %vm500, %v523, 0
    %530 = vmatprep.subr.bf16.mxu0 0
    %531 = vmatpush1.bf16.msra.mxu0 %v525
    %532 = vmatprep.subr.bf16.mxu0 0
    %533 = vmatpush1.bf16.msra.mxu0 0
    %534 = vmatprep.subr.bf16.mxu0 0
    %535 = vmatpush1.bf16.msra.mxu0 0
    %536 = vmatprep.subr.bf16.mxu0 0
    %537 = vmatpush1.bf16.msra.mxu0 0
    %538 = vmatprep.subr.bf16.mxu0 0
    %539 = vmatpush1.bf16.msra.mxu0 0
    %540 = vmatprep.subr.bf16.mxu0 0
    %541 = vmatpush1.bf16.msra.mxu0 0
    %542 = vmatprep.subr.bf16.mxu0 0
    %543 = vmatpush1.bf16.msra.mxu0 0
    %544 = vmatprep.subr.bf16.mxu0 0
    %545 = vmatpush1.bf16.msra.mxu0 0
    %546 = vmatprep.subr.bf16.mxu0 0
    %547 = vmatpush1.bf16.msra.mxu0 0
    %548 = vmatprep.subr.bf16.mxu0 0
    %549 = vmatpush1.bf16.msra.mxu0 0
    %550 = vmatprep.subr.bf16.mxu0 0
    %551 = vmatpush1.bf16.msra.mxu0 0
    %552 = vmatprep.subr.bf16.mxu0 0
    %553 = vmatpush1.bf16.msra.mxu0 0
    %554 = vmatprep.subr.bf16.mxu0 0
    %555 = vmatpush1.bf16.msra.mxu0 0
    %556 = vmatprep.subr.bf16.mxu0 0
    %557 = vmatpush1.bf16.msra.mxu0 0
    %558 = vmatprep.subr.bf16.mxu0 0
    %559 = vmatpush1.bf16.msra.mxu0 0
    %560 = vmatprep.subr.bf16.mxu0 0
    %561 = vmatpush1.bf16.msra.mxu0 0
    %562 = vmatprep.mubr.bf16.mxu0 0
    %563 = vmatmul.mubr.bf16.gmra.mrb[0].mxu0 %v528
    %v564 = vpop.f32.mrb[0].mxu0
    %v565 = vadd.f32 0.0, %v564
    %v566 = vpop.f32.mrb[0].mxu0
    %v567 = vpop.f32.mrb[0].mxu0
    %v568 = vadd.f32 0.0, %v567
    %v569 = vpop.f32.mrb[0].mxu0
    %570 = vdwg.mxu0
    %s571 = scalar_lea.vmem [#allocation4], 16
    %v572 = vld [vmem:[%s571] sm:$0xf]
    %v573 = vld [vmem:[%s571 + $0x4] sm:$0xf]
    %v574 = vld [vmem:[%s571 + $0x8] sm:$0xf]
    %v575 = vld [vmem:[%s571 + $0xc] sm:$0xf]
    %v576 = vpack.c.bf16 %v568, %v565
    %s577 = scalar_lea.vmem [#allocation6], 1
    %v578 = vld [vmem:[%s577] sm:$0x1]
    %v580 = vlaneseq
    %v581 = vshrl.u32 %v580, 7
    %v582 = vsub.s32 0, %v581
    %v583 = vrot.slane %v578, %v582
    %v589 = vunpack.c.l.b16 %v572
    %v590 = vunpack.c.l.b16 %v573
    %v591 = vunpack.c.l.b16 %v574
    %v592 = vunpack.c.l.b16 %v575
    %v593 = vpack.c.b16 %v590, %v589
    %v594 = vpack.c.b16 %v592, %v591
    %v598 = vsel %vm152, %v576, 0
    %600 = vmatprep.subr.bf16.mxu0 0
    %601 = vmatpush1.bf16.msra.mxu0 %v593
    %602 = vmatprep.subr.bf16.mxu0 0
    %603 = vmatpush1.bf16.msra.mxu0 %v594
    %604 = vmatprep.subr.bf16.mxu0 0
    %605 = vmatpush1.bf16.msra.mxu0 0
    %606 = vmatprep.subr.bf16.mxu0 0
    %607 = vmatpush1.bf16.msra.mxu0 0
    %608 = vmatprep.subr.bf16.mxu0 0
    %609 = vmatpush1.bf16.msra.mxu0 0
    %610 = vmatprep.subr.bf16.mxu0 0
    %611 = vmatpush1.bf16.msra.mxu0 0
    %612 = vmatprep.subr.bf16.mxu0 0
    %613 = vmatpush1.bf16.msra.mxu0 0
    %614 = vmatprep.subr.bf16.mxu0 0
    %615 = vmatpush1.bf16.msra.mxu0 0
    %616 = vmatprep.subr.bf16.mxu0 0
    %617 = vmatpush1.bf16.msra.mxu0 0
    %618 = vmatprep.subr.bf16.mxu0 0
    %619 = vmatpush1.bf16.msra.mxu0 0
    %620 = vmatprep.subr.bf16.mxu0 0
    %621 = vmatpush1.bf16.msra.mxu0 0
    %622 = vmatprep.subr.bf16.mxu0 0
    %623 = vmatpush1.bf16.msra.mxu0 0
    %624 = vmatprep.subr.bf16.mxu0 0
    %625 = vmatpush1.bf16.msra.mxu0 0
    %626 = vmatprep.subr.bf16.mxu0 0
    %627 = vmatpush1.bf16.msra.mxu0 0
    %628 = vmatprep.subr.bf16.mxu0 0
    %629 = vmatpush1.bf16.msra.mxu0 0
    %630 = vmatprep.subr.bf16.mxu0 0
    %631 = vmatpush1.bf16.msra.mxu0 0
    %632 = vmatprep.mubr.bf16.mxu0 0
    %633 = vmatmul.mubr.bf16.gmra.mrb[0].mxu0 %v598
    %v634 = vpop.f32.mrb[0].mxu0
    %v635 = vadd.f32 %v583, %v634
    %v636 = vpop.f32.mrb[0].mxu0
    %v637 = vpop.f32.mrb[0].mxu0
    %v638 = vadd.f32 %v583, %v637
    %v639 = vpop.f32.mrb[0].mxu0
    %640 = vdwg.mxu0
    %s641 = scalar_lea.vmem %s2, 32
    %v642 = vld [vmem:[%s641] sm:$0xf]
    %v643 = vld [vmem:[%s641 + $0x4] sm:$0xf]
    %v644 = vld [vmem:[%s641 + $0x8] sm:$0xf]
    %v645 = vld [vmem:[%s641 + $0xc] sm:$0xf]
    %s646 = scalar_lea.vmem [#allocation2], 2
    %v647 = vld [vmem:[%s646] sm:$0x1]
    %v649 = vlaneseq
    %v650 = vshrl.u32 %v649, 7
    %v651 = vsub.s32 0, %v650
    %v652 = vrot.slane %v647, %v651
    %v656 = vunpack.c.l.b16 %v124
    %v657 = vunpack.c.l.b16 %v125
    %v658 = vpack.c.b16 %v657, %v656
    %v663 = vunpack.c.l.b16 %v642
    %v664 = vunpack.c.l.b16 %v643
    %v665 = vunpack.c.l.b16 %v644
    %v666 = vunpack.c.l.b16 %v645
    %v667 = vpack.c.b16 %v664, %v663
    %v668 = vpack.c.b16 %v666, %v665
    %v672 = vsel %vm152, %v658, 0
    %674 = vmatprep.subr.bf16.mxu0 0
    %675 = vmatpush1.bf16.msra.mxu0 %v667
    %676 = vmatprep.subr.bf16.mxu0 0
    %677 = vmatpush1.bf16.msra.mxu0 %v668
    %678 = vmatprep.subr.bf16.mxu0 0
    %679 = vmatpush1.bf16.msra.mxu0 0
    %680 = vmatprep.subr.bf16.mxu0 0
    %681 = vmatpush1.bf16.msra.mxu0 0
    %682 = vmatprep.subr.bf16.mxu0 0
    %683 = vmatpush1.bf16.msra.mxu0 0
    %684 = vmatprep.subr.bf16.mxu0 0
    %685 = vmatpush1.bf16.msra.mxu0 0
    %686 = vmatprep.subr.bf16.mxu0 0
    %687 = vmatpush1.bf16.msra.mxu0 0
    %688 = vmatprep.subr.bf16.mxu0 0
    %689 = vmatpush1.bf16.msra.mxu0 0
    %690 = vmatprep.subr.bf16.mxu0 0
    %691 = vmatpush1.bf16.msra.mxu0 0
    %692 = vmatprep.subr.bf16.mxu0 0
    %693 = vmatpush1.bf16.msra.mxu0 0
    %694 = vmatprep.subr.bf16.mxu0 0
    %695 = vmatpush1.bf16.msra.mxu0 0
    %696 = vmatprep.subr.bf16.mxu0 0
    %697 = vmatpush1.bf16.msra.mxu0 0
    %698 = vmatprep.subr.bf16.mxu0 0
    %699 = vmatpush1.bf16.msra.mxu0 0
    %700 = vmatprep.subr.bf16.mxu0 0
    %701 = vmatpush1.bf16.msra.mxu0 0
    %702 = vmatprep.subr.bf16.mxu0 0
    %703 = vmatpush1.bf16.msra.mxu0 0
    %704 = vmatprep.subr.bf16.mxu0 0
    %705 = vmatpush1.bf16.msra.mxu0 0
    %706 = vmatprep.mubr.bf16.mxu0 0
    %707 = vmatmul.mubr.bf16.gmra.mrb[0].mxu0 %v672
    %v708 = vpop.f32.mrb[0].mxu0
    %v709 = vadd.f32 %v652, %v708
    %v710 = vpop.f32.mrb[0].mxu0
    %v711 = vpop.f32.mrb[0].mxu0
    %v712 = vadd.f32 %v652, %v711
    %v713 = vpop.f32.mrb[0].mxu0
    %714 = vdwg.mxu0
    %v715 = vpack.c.bf16 %v712, %v709
    %717 = vrot.lane.b32.xlu0 %v715, 96
    %v718 = vpop.permute.xlu0 %717
    %v720 = vsel %vm152, %v715, 0
    %v723 = vsel %vm152, %v718, 0
    %725 = vmatprep.subr.bf16.mxu0 0
    %726 = vmatpush1.bf16.xpose.msra.mxu0 %v723
    %727 = vmatprep.subr.bf16.mxu0 0
    %728 = vmatpush1.bf16.xpose.msra.mxu0 0
    %729 = vmatprep.subr.bf16.mxu0 0
    %730 = vmatpush1.bf16.xpose.msra.mxu0 0
    %731 = vmatprep.subr.bf16.mxu0 0
    %732 = vmatpush1.bf16.xpose.msra.mxu0 0
    %733 = vmatprep.subr.bf16.mxu0 0
    %734 = vmatpush1.bf16.xpose.msra.mxu0 0
    %735 = vmatprep.subr.bf16.mxu0 0
    %736 = vmatpush1.bf16.xpose.msra.mxu0 0
    %737 = vmatprep.subr.bf16.mxu0 0
    %738 = vmatpush1.bf16.xpose.msra.mxu0 0
    %739 = vmatprep.subr.bf16.mxu0 0
    %740 = vmatpush1.bf16.xpose.msra.mxu0 0
    %741 = vmatprep.subr.bf16.mxu0 0
    %742 = vmatpush1.bf16.xpose.msra.mxu0 0
    %743 = vmatprep.subr.bf16.mxu0 0
    %744 = vmatpush1.bf16.xpose.msra.mxu0 0
    %745 = vmatprep.subr.bf16.mxu0 0
    %746 = vmatpush1.bf16.xpose.msra.mxu0 0
    %747 = vmatprep.subr.bf16.mxu0 0
    %748 = vmatpush1.bf16.xpose.msra.mxu0 0
    %749 = vmatprep.subr.bf16.mxu0 0
    %750 = vmatpush1.bf16.xpose.msra.mxu0 0
    %751 = vmatprep.subr.bf16.mxu0 0
    %752 = vmatpush1.bf16.xpose.msra.mxu0 0
    %753 = vmatprep.subr.bf16.mxu0 0
    %754 = vmatpush1.bf16.xpose.msra.mxu0 0
    %755 = vmatprep.subr.bf16.mxu0 0
    %756 = vmatpush1.bf16.xpose.msra.mxu0 0
    %757 = vmatprep.mubr.bf16.mxu0 0
    %758 = vmatmul.mubr.bf16.gmra.mrb[0].mxu0 %v720
    %v759 = vpop.f32.mrb[0].mxu0
    %v760 = vadd.f32 0.0, %v759
    %v761 = vpop.f32.mrb[0].mxu0
    %v762 = vpop.f32.mrb[0].mxu0
    %v763 = vadd.f32 0.0, %v762
    %v764 = vpop.f32.mrb[0].mxu0
    %765 = vdwg.mxu0
    %v766 = vsel %vm500, %v760, -inf
    %767 = vmax.xlane.f32.xlu0 %v766
    %v768 = vpop.xlane.xlu0 %767
    %v769 = vsel %vm500, %v763, -inf
    %770 = vmax.xlane.f32.xlu0 %v769
    %v771 = vpop.xlane.xlu0 %770
    %v772 = vsub.f32 %v760, %v768
    %v773 = vsub.f32 %v763, %v771
    %v774 = vmul.f32 %v772, 1.442695
    %v775 = vpow.pop %v774
    %v776 = vmul.f32 %v773, 1.442695
    %v777 = vpow.pop %v776
    %v778 = vsel %vm500, %v775, 0.0
    %779 = vadd.xlane.f32.xlu0 %v778
    %v780 = vpop.xlane.xlu0 %779
    %v781 = vsel %vm500, %v777, 0.0
    %782 = vadd.xlane.f32.xlu0 %v781
    %v783 = vpop.xlane.xlu0 %782
    %v784 = vrcp.pop %v780
    %v785 = vrcp.pop %v783
    %v786 = vmul.f32 %v775, %v784
    %v787 = vmul.f32 %v777, %v785
    %v788 = vpack.c.bf16 %v787, %v786
    %789 = vrot.lane.b32.xlu0 %v715, 64
    %v790 = vpop.permute.xlu0 %789
    %v793 = vsel %vm500, %v788, 0
    %795 = vmatprep.subr.bf16.mxu0 0
    %796 = vmatpush1.bf16.msra.mxu0 %v790
    %797 = vmatprep.subr.bf16.mxu0 0
    %798 = vmatpush1.bf16.msra.mxu0 0
    %799 = vmatprep.subr.bf16.mxu0 0
    %800 = vmatpush1.bf16.msra.mxu0 0
    %801 = vmatprep.subr.bf16.mxu0 0
    %802 = vmatpush1.bf16.msra.mxu0 0
    %803 = vmatprep.subr.bf16.mxu0 0
    %804 = vmatpush1.bf16.msra.mxu0 0
    %805 = vmatprep.subr.bf16.mxu0 0
    %806 = vmatpush1.bf16.msra.mxu0 0
    %807 = vmatprep.subr.bf16.mxu0 0
    %808 = vmatpush1.bf16.msra.mxu0 0
    %809 = vmatprep.subr.bf16.mxu0 0
    %810 = vmatpush1.bf16.msra.mxu0 0
    %811 = vmatprep.subr.bf16.mxu0 0
    %812 = vmatpush1.bf16.msra.mxu0 0
    %813 = vmatprep.subr.bf16.mxu0 0
    %814 = vmatpush1.bf16.msra.mxu0 0
    %815 = vmatprep.subr.bf16.mxu0 0
    %816 = vmatpush1.bf16.msra.mxu0 0
    %817 = vmatprep.subr.bf16.mxu0 0
    %818 = vmatpush1.bf16.msra.mxu0 0
    %819 = vmatprep.subr.bf16.mxu0 0
    %820 = vmatpush1.bf16.msra.mxu0 0
    %821 = vmatprep.subr.bf16.mxu0 0
    %822 = vmatpush1.bf16.msra.mxu0 0
    %823 = vmatprep.subr.bf16.mxu0 0
    %824 = vmatpush1.bf16.msra.mxu0 0
    %825 = vmatprep.subr.bf16.mxu0 0
    %826 = vmatpush1.bf16.msra.mxu0 0
    %827 = vmatprep.mubr.bf16.mxu0 0
    %828 = vmatmul.mubr.bf16.gmra.mrb[0].mxu0 %v793
    %v829 = vpop.f32.mrb[0].mxu0
    %v830 = vadd.f32 0.0, %v829
    %v831 = vpop.f32.mrb[0].mxu0
    %v832 = vpop.f32.mrb[0].mxu0
    %v833 = vadd.f32 0.0, %v832
    %v834 = vpop.f32.mrb[0].mxu0
    %835 = vdwg.mxu0
    %s836 = scalar_lea.vmem [#allocation4], 32
    %v837 = vld [vmem:[%s836] sm:$0xf]
    %v838 = vld [vmem:[%s836 + $0x4] sm:$0xf]
    %v839 = vld [vmem:[%s836 + $0x8] sm:$0xf]
    %v840 = vld [vmem:[%s836 + $0xc] sm:$0xf]
    %v841 = vpack.c.bf16 %v833, %v830
    %s842 = scalar_lea.vmem [#allocation6], 2
    %v843 = vld [vmem:[%s842] sm:$0x1]
    %v845 = vlaneseq
    %v846 = vshrl.u32 %v845, 7
    %v847 = vsub.s32 0, %v846
    %v848 = vrot.slane %v843, %v847
    %v854 = vunpack.c.l.b16 %v837
    %v855 = vunpack.c.l.b16 %v838
    %v856 = vunpack.c.l.b16 %v839
    %v857 = vunpack.c.l.b16 %v840
    %v858 = vpack.c.b16 %v855, %v854
    %v859 = vpack.c.b16 %v857, %v856
    %v863 = vsel %vm152, %v841, 0
    %865 = vmatprep.subr.bf16.mxu0 0
    %866 = vmatpush1.bf16.msra.mxu0 %v858
    %867 = vmatprep.subr.bf16.mxu0 0
    %868 = vmatpush1.bf16.msra.mxu0 %v859
    %869 = vmatprep.subr.bf16.mxu0 0
    %870 = vmatpush1.bf16.msra.mxu0 0
    %871 = vmatprep.subr.bf16.mxu0 0
    %872 = vmatpush1.bf16.msra.mxu0 0
    %873 = vmatprep.subr.bf16.mxu0 0
    %874 = vmatpush1.bf16.msra.mxu0 0
    %875 = vmatprep.subr.bf16.mxu0 0
    %876 = vmatpush1.bf16.msra.mxu0 0
    %877 = vmatprep.subr.bf16.mxu0 0
    %878 = vmatpush1.bf16.msra.mxu0 0
    %879 = vmatprep.subr.bf16.mxu0 0
    %880 = vmatpush1.bf16.msra.mxu0 0
    %881 = vmatprep.subr.bf16.mxu0 0
    %882 = vmatpush1.bf16.msra.mxu0 0
    %883 = vmatprep.subr.bf16.mxu0 0
    %884 = vmatpush1.bf16.msra.mxu0 0
    %885 = vmatprep.subr.bf16.mxu0 0
    %886 = vmatpush1.bf16.msra.mxu0 0
    %887 = vmatprep.subr.bf16.mxu0 0
    %888 = vmatpush1.bf16.msra.mxu0 0
    %889 = vmatprep.subr.bf16.mxu0 0
    %890 = vmatpush1.bf16.msra.mxu0 0
    %891 = vmatprep.subr.bf16.mxu0 0
    %892 = vmatpush1.bf16.msra.mxu0 0
    %893 = vmatprep.subr.bf16.mxu0 0
    %894 = vmatpush1.bf16.msra.mxu0 0
    %895 = vmatprep.subr.bf16.mxu0 0
    %896 = vmatpush1.bf16.msra.mxu0 0
    %897 = vmatprep.mubr.bf16.mxu0 0
    %898 = vmatmul.mubr.bf16.gmra.mrb[0].mxu0 %v863
    %v899 = vpop.f32.mrb[0].mxu0
    %v900 = vadd.f32 %v848, %v899
    %v901 = vpop.f32.mrb[0].mxu0
    %v902 = vpop.f32.mrb[0].mxu0
    %v903 = vadd.f32 %v848, %v902
    %v904 = vpop.f32.mrb[0].mxu0
    %905 = vdwg.mxu0
    %v906 = vld [vmem:[#allocation9] sm:$0xf]
    %v907 = vld [vmem:[#allocation9 + $0x4] sm:$0xf]
    %v908 = vld [vmem:[#allocation9 + $0x8] sm:$0xf]
    %v909 = vld [vmem:[#allocation9 + $0xc] sm:$0xf]
    %v910 = vpack.c.bf16 %v370, %v370
    %v911 = vld [vmem:[#allocation10] sm:$0x1]
    %v913 = vlaneseq
    %v914 = vshrl.u32 %v913, 7
    %v915 = vsub.s32 0, %v914
    %v916 = vrot.slane %v911, %v915
    %v922 = vunpack.c.l.b16 %v906
    %v923 = vunpack.c.l.b16 %v907
    %v924 = vunpack.c.l.b16 %v908
    %v925 = vunpack.c.l.b16 %v909
    %v926 = vpack.c.b16 %v923, %v922
    %v927 = vpack.c.b16 %v925, %v924
    %v931 = vsel %vm152, %v910, 0
    %933 = vmatprep.subr.bf16.mxu0 0
    %934 = vmatpush1.bf16.msra.mxu0 %v926
    %935 = vmatprep.subr.bf16.mxu0 0
    %936 = vmatpush1.bf16.msra.mxu0 %v927
    %937 = vmatprep.subr.bf16.mxu0 0
    %938 = vmatpush1.bf16.msra.mxu0 0
    %939 = vmatprep.subr.bf16.mxu0 0
    %940 = vmatpush1.bf16.msra.mxu0 0
    %941 = vmatprep.subr.bf16.mxu0 0
    %942 = vmatpush1.bf16.msra.mxu0 0
    %943 = vmatprep.subr.bf16.mxu0 0
    %944 = vmatpush1.bf16.msra.mxu0 0
    %945 = vmatprep.subr.bf16.mxu0 0
    %946 = vmatpush1.bf16.msra.mxu0 0
    %947 = vmatprep.subr.bf16.mxu0 0
    %948 = vmatpush1.bf16.msra.mxu0 0
    %949 = vmatprep.subr.bf16.mxu0 0
    %950 = vmatpush1.bf16.msra.mxu0 0
    %951 = vmatprep.subr.bf16.mxu0 0
    %952 = vmatpush1.bf16.msra.mxu0 0
    %953 = vmatprep.subr.bf16.mxu0 0
    %954 = vmatpush1.bf16.msra.mxu0 0
    %955 = vmatprep.subr.bf16.mxu0 0
    %956 = vmatpush1.bf16.msra.mxu0 0
    %957 = vmatprep.subr.bf16.mxu0 0
    %958 = vmatpush1.bf16.msra.mxu0 0
    %959 = vmatprep.subr.bf16.mxu0 0
    %960 = vmatpush1.bf16.msra.mxu0 0
    %961 = vmatprep.subr.bf16.mxu0 0
    %962 = vmatpush1.bf16.msra.mxu0 0
    %963 = vmatprep.subr.bf16.mxu0 0
    %964 = vmatpush1.bf16.msra.mxu0 0
    %965 = vmatprep.mubr.bf16.mxu0 0
    %966 = vmatmul.mubr.bf16.gmra.mrb[0].mxu0 %v931
    %v967 = vpop.f32.mrb[0].mxu0
    %v968 = vadd.f32 %v916, %v967
    %v969 = vpop.f32.mrb[0].mxu0
    %v970 = vpop.f32.mrb[0].mxu0
    %v971 = vpop.f32.mrb[0].mxu0
    %972 = vdwg.mxu0
    %s973 = scalar_lea.vmem [#allocation9], 16
    %v974 = vld [vmem:[%s973] sm:$0xf]
    %v975 = vld [vmem:[%s973 + $0x4] sm:$0xf]
    %v976 = vld [vmem:[%s973 + $0x8] sm:$0xf]
    %v977 = vld [vmem:[%s973 + $0xc] sm:$0xf]
    %v978 = vpack.c.bf16 %v638, %v635
    %s979 = scalar_lea.vmem [#allocation10], 1
    %v980 = vld [vmem:[%s979] sm:$0x1]
    %v982 = vlaneseq
    %v983 = vshrl.u32 %v982, 7
    %v984 = vsub.s32 0, %v983
    %v985 = vrot.slane %v980, %v984
    %v991 = vunpack.c.l.b16 %v974
    %v992 = vunpack.c.l.b16 %v975
    %v993 = vunpack.c.l.b16 %v976
    %v994 = vunpack.c.l.b16 %v977
    %v995 = vpack.c.b16 %v992, %v991
    %v996 = vpack.c.b16 %v994, %v993
    %v1000 = vsel %vm152, %v978, 0
    %1002 = vmatprep.subr.bf16.mxu0 0
    %1003 = vmatpush1.bf16.msra.mxu0 %v995
    %1004 = vmatprep.subr.bf16.mxu0 0
    %1005 = vmatpush1.bf16.msra.mxu0 %v996
    %1006 = vmatprep.subr.bf16.mxu0 0
    %1007 = vmatpush1.bf16.msra.mxu0 0
    %1008 = vmatprep.subr.bf16.mxu0 0
    %1009 = vmatpush1.bf16.msra.mxu0 0
    %1010 = vmatprep.subr.bf16.mxu0 0
    %1011 = vmatpush1.bf16.msra.mxu0 0
    %1012 = vmatprep.subr.bf16.mxu0 0
    %1013 = vmatpush1.bf16.msra.mxu0 0
    %1014 = vmatprep.subr.bf16.mxu0 0
    %1015 = vmatpush1.bf16.msra.mxu0 0
    %1016 = vmatprep.subr.bf16.mxu0 0
    %1017 = vmatpush1.bf16.msra.mxu0 0
    %1018 = vmatprep.subr.bf16.mxu0 0
    %1019 = vmatpush1.bf16.msra.mxu0 0
    %1020 = vmatprep.subr.bf16.mxu0 0
    %1021 = vmatpush1.bf16.msra.mxu0 0
    %1022 = vmatprep.subr.bf16.mxu0 0
    %1023 = vmatpush1.bf16.msra.mxu0 0
    %1024 = vmatprep.subr.bf16.mxu0 0
    %1025 = vmatpush1.bf16.msra.mxu0 0
    %1026 = vmatprep.subr.bf16.mxu0 0
    %1027 = vmatpush1.bf16.msra.mxu0 0
    %1028 = vmatprep.subr.bf16.mxu0 0
    %1029 = vmatpush1.bf16.msra.mxu0 0
    %1030 = vmatprep.subr.bf16.mxu0 0
    %1031 = vmatpush1.bf16.msra.mxu0 0
    %1032 = vmatprep.subr.bf16.mxu0 0
    %1033 = vmatpush1.bf16.msra.mxu0 0
    %1034 = vmatprep.mubr.bf16.mxu0 0
    %1035 = vmatmul.mubr.bf16.gmra.mrb[0].mxu0 %v1000
    %v1036 = vpop.f32.mrb[0].mxu0
    %v1037 = vadd.f32 %v985, %v1036
    %v1038 = vpop.f32.mrb[0].mxu0
    %v1039 = vpop.f32.mrb[0].mxu0
    %v1040 = vadd.f32 %v985, %v1039
    %v1041 = vpop.f32.mrb[0].mxu0
    %1042 = vdwg.mxu0
    %v1043 = vld [vmem:[#allocation7] sm:$0xf]
    %v1044 = vld [vmem:[#allocation7 + $0x4] sm:$0xf]
    %v1045 = vld [vmem:[#allocation7 + $0x8] sm:$0xf]
    %v1046 = vld [vmem:[#allocation7 + $0xc] sm:$0xf]
    %v1051 = vunpack.c.l.b16 %v1043
    %v1052 = vunpack.c.l.b16 %v1044
    %v1053 = vunpack.c.l.b16 %v1045
    %v1054 = vunpack.c.l.b16 %v1046
    %v1055 = vpack.c.b16 %v1052, %v1051
    %v1056 = vpack.c.b16 %v1054, %v1053
    %1059 = vmatprep.subr.bf16.mxu0 0
    %1060 = vmatpush1.bf16.msra.mxu0 %v1055
    %1061 = vmatprep.subr.bf16.mxu0 0
    %1062 = vmatpush1.bf16.msra.mxu0 %v1056
    %1063 = vmatprep.subr.bf16.mxu0 0
    %1064 = vmatpush1.bf16.msra.mxu0 0
    %1065 = vmatprep.subr.bf16.mxu0 0
    %1066 = vmatpush1.bf16.msra.mxu0 0
    %1067 = vmatprep.subr.bf16.mxu0 0
    %1068 = vmatpush1.bf16.msra.mxu0 0
    %1069 = vmatprep.subr.bf16.mxu0 0
    %1070 = vmatpush1.bf16.msra.mxu0 0
    %1071 = vmatprep.subr.bf16.mxu0 0
    %1072 = vmatpush1.bf16.msra.mxu0 0
    %1073 = vmatprep.subr.bf16.mxu0 0
    %1074 = vmatpush1.bf16.msra.mxu0 0
    %1075 = vmatprep.subr.bf16.mxu0 0
    %1076 = vmatpush1.bf16.msra.mxu0 0
    %1077 = vmatprep.subr.bf16.mxu0 0
    %1078 = vmatpush1.bf16.msra.mxu0 0
    %1079 = vmatprep.subr.bf16.mxu0 0
    %1080 = vmatpush1.bf16.msra.mxu0 0
    %1081 = vmatprep.subr.bf16.mxu0 0
    %1082 = vmatpush1.bf16.msra.mxu0 0
    %1083 = vmatprep.subr.bf16.mxu0 0
    %1084 = vmatpush1.bf16.msra.mxu0 0
    %1085 = vmatprep.subr.bf16.mxu0 0
    %1086 = vmatpush1.bf16.msra.mxu0 0
    %1087 = vmatprep.subr.bf16.mxu0 0
    %1088 = vmatpush1.bf16.msra.mxu0 0
    %1089 = vmatprep.subr.bf16.mxu0 0
    %1090 = vmatpush1.bf16.msra.mxu0 0
    %1091 = vmatprep.mubr.bf16.mxu0 0
    %1092 = vmatmul.mubr.bf16.gmra.mrb[0].mxu0 %v1000
    %v1093 = vpop.f32.mrb[0].mxu0
    %v1094 = vadd.f32 0.0, %v1093
    %v1095 = vpop.f32.mrb[0].mxu0
    %v1096 = vpop.f32.mrb[0].mxu0
    %v1097 = vadd.f32 0.0, %v1096
    %v1098 = vpop.f32.mrb[0].mxu0
    %1099 = vdwg.mxu0
    %v1100 = vpack.c.bf16 %v1097, %v1094
    %v1102 = vsel %vm500, %v126, 0
    %1104 = vmatprep.subr.bf16.mxu0 0
    %1105 = vmatpush1.bf16.msra.mxu0 %v1100
    %1106 = vmatprep.subr.bf16.mxu0 0
    %1107 = vmatpush1.bf16.msra.mxu0 0
    %1108 = vmatprep.subr.bf16.mxu0 0
    %1109 = vmatpush1.bf16.msra.mxu0 0
    %1110 = vmatprep.subr.bf16.mxu0 0
    %1111 = vmatpush1.bf16.msra.mxu0 0
    %1112 = vmatprep.subr.bf16.mxu0 0
    %1113 = vmatpush1.bf16.msra.mxu0 0
    %1114 = vmatprep.subr.bf16.mxu0 0
    %1115 = vmatpush1.bf16.msra.mxu0 0
    %1116 = vmatprep.subr.bf16.mxu0 0
    %1117 = vmatpush1.bf16.msra.mxu0 0
    %1118 = vmatprep.subr.bf16.mxu0 0
    %1119 = vmatpush1.bf16.msra.mxu0 0
    %1120 = vmatprep.subr.bf16.mxu0 0
    %1121 = vmatpush1.bf16.msra.mxu0 0
    %1122 = vmatprep.subr.bf16.mxu0 0
    %1123 = vmatpush1.bf16.msra.mxu0 0
    %1124 = vmatprep.subr.bf16.mxu0 0
    %1125 = vmatpush1.bf16.msra.mxu0 0
    %1126 = vmatprep.subr.bf16.mxu0 0
    %1127 = vmatpush1.bf16.msra.mxu0 0
    %1128 = vmatprep.subr.bf16.mxu0 0
    %1129 = vmatpush1.bf16.msra.mxu0 0
    %1130 = vmatprep.subr.bf16.mxu0 0
    %1131 = vmatpush1.bf16.msra.mxu0 0
    %1132 = vmatprep.subr.bf16.mxu0 0
    %1133 = vmatpush1.bf16.msra.mxu0 0
    %1134 = vmatprep.subr.bf16.mxu0 0
    %1135 = vmatpush1.bf16.msra.mxu0 0
    %1136 = vmatprep.mubr.bf16.mxu0 0
    %1137 = vmatmul.mubr.bf16.gmra.mrb[0].mxu0 %v1102
    %v1138 = vpop.f32.mrb[0].mxu0
    %v1139 = vadd.f32 0.0, %v1138
    %v1140 = vpop.f32.mrb[0].mxu0
    %v1141 = vpop.f32.mrb[0].mxu0
    %v1142 = vpop.f32.mrb[0].mxu0
    %1143 = vdwg.mxu0
    %v1144 = vadd.f32 %v968, %v1139
    %s1145 = scalar_lea.vmem [#allocation7], 16
    %v1146 = vld [vmem:[%s1145] sm:$0xf]
    %v1147 = vld [vmem:[%s1145 + $0x4] sm:$0xf]
    %v1148 = vld [vmem:[%s1145 + $0x8] sm:$0xf]
    %v1149 = vld [vmem:[%s1145 + $0xc] sm:$0xf]
    %v1150 = vpack.c.bf16 %v903, %v900
    %v1155 = vunpack.c.l.b16 %v1146
    %v1156 = vunpack.c.l.b16 %v1147
    %v1157 = vunpack.c.l.b16 %v1148
    %v1158 = vunpack.c.l.b16 %v1149
    %v1159 = vpack.c.b16 %v1156, %v1155
    %v1160 = vpack.c.b16 %v1158, %v1157
    %v1164 = vsel %vm152, %v1150, 0
    %1166 = vmatprep.subr.bf16.mxu0 0
    %1167 = vmatpush1.bf16.msra.mxu0 %v1159
    %1168 = vmatprep.subr.bf16.mxu0 0
    %1169 = vmatpush1.bf16.msra.mxu0 %v1160
    %1170 = vmatprep.subr.bf16.mxu0 0
    %1171 = vmatpush1.bf16.msra.mxu0 0
    %1172 = vmatprep.subr.bf16.mxu0 0
    %1173 = vmatpush1.bf16.msra.mxu0 0
    %1174 = vmatprep.subr.bf16.mxu0 0
    %1175 = vmatpush1.bf16.msra.mxu0 0
    %1176 = vmatprep.subr.bf16.mxu0 0
    %1177 = vmatpush1.bf16.msra.mxu0 0
    %1178 = vmatprep.subr.bf16.mxu0 0
    %1179 = vmatpush1.bf16.msra.mxu0 0
    %1180 = vmatprep.subr.bf16.mxu0 0
    %1181 = vmatpush1.bf16.msra.mxu0 0
    %1182 = vmatprep.subr.bf16.mxu0 0
    %1183 = vmatpush1.bf16.msra.mxu0 0
    %1184 = vmatprep.subr.bf16.mxu0 0
    %1185 = vmatpush1.bf16.msra.mxu0 0
    %1186 = vmatprep.subr.bf16.mxu0 0
    %1187 = vmatpush1.bf16.msra.mxu0 0
    %1188 = vmatprep.subr.bf16.mxu0 0
    %1189 = vmatpush1.bf16.msra.mxu0 0
    %1190 = vmatprep.subr.bf16.mxu0 0
    %1191 = vmatpush1.bf16.msra.mxu0 0
    %1192 = vmatprep.subr.bf16.mxu0 0
    %1193 = vmatpush1.bf16.msra.mxu0 0
    %1194 = vmatprep.subr.bf16.mxu0 0
    %1195 = vmatpush1.bf16.msra.mxu0 0
    %1196 = vmatprep.subr.bf16.mxu0 0
    %1197 = vmatpush1.bf16.msra.mxu0 0
    %1198 = vmatprep.mubr.bf16.mxu0 0
    %1199 = vmatmul.mubr.bf16.gmra.mrb[0].mxu0 %v1164
    %v1200 = vpop.f32.mrb[0].mxu0
    %v1201 = vadd.f32 0.0, %v1200
    %v1202 = vpop.f32.mrb[0].mxu0
    %v1203 = vpop.f32.mrb[0].mxu0
    %v1204 = vadd.f32 0.0, %v1203
    %v1205 = vpop.f32.mrb[0].mxu0
    %1206 = vdwg.mxu0
    %v1207 = vpack.c.bf16 %v1204, %v1201
    %v1210 = vunpack.c.l.b16 %v127
    %v1211 = vunpack.c.l.b16 %v128
    %v1212 = vpack.c.b16 %v1211, %v1210
    %v1214 = vsel %vm500, %v1212, 0
    %1216 = vmatprep.subr.bf16.mxu0 0
    %1217 = vmatpush1.bf16.msra.mxu0 %v1207
    %1218 = vmatprep.subr.bf16.mxu0 0
    %1219 = vmatpush1.bf16.msra.mxu0 0
    %1220 = vmatprep.subr.bf16.mxu0 0
    %1221 = vmatpush1.bf16.msra.mxu0 0
    %1222 = vmatprep.subr.bf16.mxu0 0
    %1223 = vmatpush1.bf16.msra.mxu0 0
    %1224 = vmatprep.subr.bf16.mxu0 0
    %1225 = vmatpush1.bf16.msra.mxu0 0
    %1226 = vmatprep.subr.bf16.mxu0 0
    %1227 = vmatpush1.bf16.msra.mxu0 0
    %1228 = vmatprep.subr.bf16.mxu0 0
    %1229 = vmatpush1.bf16.msra.mxu0 0
    %1230 = vmatprep.subr.bf16.mxu0 0
    %1231 = vmatpush1.bf16.msra.mxu0 0
    %1232 = vmatprep.subr.bf16.mxu0 0
    %1233 = vmatpush1.bf16.msra.mxu0 0
    %1234 = vmatprep.subr.bf16.mxu0 0
    %1235 = vmatpush1.bf16.msra.mxu0 0
    %1236 = vmatprep.subr.bf16.mxu0 0
    %1237 = vmatpush1.bf16.msra.mxu0 0
    %1238 = vmatprep.subr.bf16.mxu0 0
    %1239 = vmatpush1.bf16.msra.mxu0 0
    %1240 = vmatprep.subr.bf16.mxu0 0
    %1241 = vmatpush1.bf16.msra.mxu0 0
    %1242 = vmatprep.subr.bf16.mxu0 0
    %1243 = vmatpush1.bf16.msra.mxu0 0
    %1244 = vmatprep.subr.bf16.mxu0 0
    %1245 = vmatpush1.bf16.msra.mxu0 0
    %1246 = vmatprep.subr.bf16.mxu0 0
    %1247 = vmatpush1.bf16.msra.mxu0 0
    %1248 = vmatprep.mubr.bf16.mxu0 0
    %1249 = vmatmul.mubr.bf16.gmra.mrb[0].mxu0 %v1214
    %v1250 = vpop.f32.mrb[0].mxu0
    %v1251 = vadd.f32 0.0, %v1250
    %v1252 = vpop.f32.mrb[0].mxu0
    %v1253 = vpop.f32.mrb[0].mxu0
    %v1254 = vadd.f32 0.0, %v1253
    %v1255 = vpop.f32.mrb[0].mxu0
    %1256 = vdwg.mxu0
    %v1257 = vadd.f32 %v1037, %v1251
    %v1258 = vadd.f32 %v1040, %v1254
    %s1259 = scalar_lea.vmem %s2, 48
    %v1260 = vld [vmem:[%s1259] sm:$0xf]
    %v1261 = vld [vmem:[%s1259 + $0x4] sm:$0xf]
    %v1262 = vld [vmem:[%s1259 + $0x8] sm:$0xf]
    %v1263 = vld [vmem:[%s1259 + $0xc] sm:$0xf]
    %v1264 = vpack.c.bf16 %v1144, %v1144
    %s1265 = scalar_lea.vmem [#allocation2], 3
    %v1266 = vld [vmem:[%s1265] sm:$0x1]
    %v1268 = vlaneseq
    %v1269 = vshrl.u32 %v1268, 7
    %v1270 = vsub.s32 0, %v1269
    %v1271 = vrot.slane %v1266, %v1270
    %v1277 = vunpack.c.l.b16 %v1260
    %v1278 = vunpack.c.l.b16 %v1261
    %v1279 = vunpack.c.l.b16 %v1262
    %v1280 = vunpack.c.l.b16 %v1263
    %v1281 = vpack.c.b16 %v1278, %v1277
    %v1282 = vpack.c.b16 %v1280, %v1279
    %v1286 = vsel %vm152, %v1264, 0
    %1288 = vmatprep.subr.bf16.mxu0 0
    %1289 = vmatpush1.bf16.msra.mxu0 %v1281
    %1290 = vmatprep.subr.bf16.mxu0 0
    %1291 = vmatpush1.bf16.msra.mxu0 %v1282
    %1292 = vmatprep.subr.bf16.mxu0 0
    %1293 = vmatpush1.bf16.msra.mxu0 0
    %1294 = vmatprep.subr.bf16.mxu0 0
    %1295 = vmatpush1.bf16.msra.mxu0 0
    %1296 = vmatprep.subr.bf16.mxu0 0
    %1297 = vmatpush1.bf16.msra.mxu0 0
    %1298 = vmatprep.subr.bf16.mxu0 0
    %1299 = vmatpush1.bf16.msra.mxu0 0
    %1300 = vmatprep.subr.bf16.mxu0 0
    %1301 = vmatpush1.bf16.msra.mxu0 0
    %1302 = vmatprep.subr.bf16.mxu0 0
    %1303 = vmatpush1.bf16.msra.mxu0 0
    %1304 = vmatprep.subr.bf16.mxu0 0
    %1305 = vmatpush1.bf16.msra.mxu0 0
    %1306 = vmatprep.subr.bf16.mxu0 0
    %1307 = vmatpush1.bf16.msra.mxu0 0
    %1308 = vmatprep.subr.bf16.mxu0 0
    %1309 = vmatpush1.bf16.msra.mxu0 0
    %1310 = vmatprep.subr.bf16.mxu0 0
    %1311 = vmatpush1.bf16.msra.mxu0 0
    %1312 = vmatprep.subr.bf16.mxu0 0
    %1313 = vmatpush1.bf16.msra.mxu0 0
    %1314 = vmatprep.subr.bf16.mxu0 0
    %1315 = vmatpush1.bf16.msra.mxu0 0
    %1316 = vmatprep.subr.bf16.mxu0 0
    %1317 = vmatpush1.bf16.msra.mxu0 0
    %1318 = vmatprep.subr.bf16.mxu0 0
    %1319 = vmatpush1.bf16.msra.mxu0 0
    %1320 = vmatprep.mubr.bf16.mxu0 0
    %1321 = vmatmul.mubr.bf16.gmra.mrb[0].mxu0 %v1286
    %v1322 = vpop.f32.mrb[0].mxu0
    %v1323 = vadd.f32 %v1271, %v1322
    %v1324 = vpop.f32.mrb[0].mxu0
    %v1325 = vpop.f32.mrb[0].mxu0
    %v1326 = vpop.f32.mrb[0].mxu0
    %1327 = vdwg.mxu0
    %v1328 = vpack.c.bf16 %v1323, %v1323
    %1330 = vrot.lane.b32.xlu0 %v1328, 96
    %v1331 = vpop.permute.xlu0 %1330
    %v1333 = vsel %vm152, %v1328, 0
    %v1336 = vsel %vm152, %v1331, 0
    %1338 = vmatprep.subr.bf16.mxu0 0
    %1339 = vmatpush1.bf16.xpose.msra.mxu0 %v1336
    %1340 = vmatprep.subr.bf16.mxu0 0
    %1341 = vmatpush1.bf16.xpose.msra.mxu0 0
    %1342 = vmatprep.subr.bf16.mxu0 0
    %1343 = vmatpush1.bf16.xpose.msra.mxu0 0
    %1344 = vmatprep.subr.bf16.mxu0 0
    %1345 = vmatpush1.bf16.xpose.msra.mxu0 0
    %1346 = vmatprep.subr.bf16.mxu0 0
    %1347 = vmatpush1.bf16.xpose.msra.mxu0 0
    %1348 = vmatprep.subr.bf16.mxu0 0
    %1349 = vmatpush1.bf16.xpose.msra.mxu0 0
    %1350 = vmatprep.subr.bf16.mxu0 0
    %1351 = vmatpush1.bf16.xpose.msra.mxu0 0
    %1352 = vmatprep.subr.bf16.mxu0 0
    %1353 = vmatpush1.bf16.xpose.msra.mxu0 0
    %1354 = vmatprep.subr.bf16.mxu0 0
    %1355 = vmatpush1.bf16.xpose.msra.mxu0 0
    %1356 = vmatprep.subr.bf16.mxu0 0
    %1357 = vmatpush1.bf16.xpose.msra.mxu0 0
    %1358 = vmatprep.subr.bf16.mxu0 0
    %1359 = vmatpush1.bf16.xpose.msra.mxu0 0
    %1360 = vmatprep.subr.bf16.mxu0 0
    %1361 = vmatpush1.bf16.xpose.msra.mxu0 0
    %1362 = vmatprep.subr.bf16.mxu0 0
    %1363 = vmatpush1.bf16.xpose.msra.mxu0 0
    %1364 = vmatprep.subr.bf16.mxu0 0
    %1365 = vmatpush1.bf16.xpose.msra.mxu0 0
    %1366 = vmatprep.subr.bf16.mxu0 0
    %1367 = vmatpush1.bf16.xpose.msra.mxu0 0
    %1368 = vmatprep.subr.bf16.mxu0 0
    %1369 = vmatpush1.bf16.xpose.msra.mxu0 0
    %1370 = vmatprep.mubr.bf16.mxu0 0
    %1371 = vmatmul.mubr.bf16.gmra.mrb[0].mxu0 %v1333
    %v1372 = vpop.f32.mrb[0].mxu0
    %v1373 = vadd.f32 0.0, %v1372
    %v1374 = vpop.f32.mrb[0].mxu0
    %v1375 = vpop.f32.mrb[0].mxu0
    %v1376 = vpop.f32.mrb[0].mxu0
    %1377 = vdwg.mxu0
    %v1378 = vsel %vm246, %v1373, -inf
    %1379 = vmax.xlane.f32.xlu0 %v1378
    %v1380 = vpop.xlane.xlu0 %1379
    %v1381 = vsub.f32 %v1373, %v1380
    %v1382 = vmul.f32 %v1381, 1.442695
    %v1383 = vpow.pop %v1382
    %v1384 = vsel %vm246, %v1383, 0.0
    %1385 = vadd.xlane.f32.xlu0 %v1384
    %v1386 = vpop.xlane.xlu0 %1385
    %v1387 = vrcp.pop %v1386
    %v1388 = vmul.f32 %v1383, %v1387
    %v1389 = vpack.c.bf16 %v1388, %v1388
    %1390 = vrot.lane.b32.xlu0 %v1328, 64
    %v1391 = vpop.permute.xlu0 %1390
    %v1393 = vsel %vm246, %v1389, 0
    %v1396 = vsel %vm264, %v1391, 0
    %1398 = vmatprep.subr.bf16.mxu0 0
    %1399 = vmatpush1.bf16.msra.mxu0 %v1396
    %1400 = vmatprep.subr.bf16.mxu0 0
    %1401 = vmatpush1.bf16.msra.mxu0 0
    %1402 = vmatprep.subr.bf16.mxu0 0
    %1403 = vmatpush1.bf16.msra.mxu0 0
    %1404 = vmatprep.subr.bf16.mxu0 0
    %1405 = vmatpush1.bf16.msra.mxu0 0
    %1406 = vmatprep.subr.bf16.mxu0 0
    %1407 = vmatpush1.bf16.msra.mxu0 0
    %1408 = vmatprep.subr.bf16.mxu0 0
    %1409 = vmatpush1.bf16.msra.mxu0 0
    %1410 = vmatprep.subr.bf16.mxu0 0
    %1411 = vmatpush1.bf16.msra.mxu0 0
    %1412 = vmatprep.subr.bf16.mxu0 0
    %1413 = vmatpush1.bf16.msra.mxu0 0
    %1414 = vmatprep.subr.bf16.mxu0 0
    %1415 = vmatpush1.bf16.msra.mxu0 0
    %1416 = vmatprep.subr.bf16.mxu0 0
    %1417 = vmatpush1.bf16.msra.mxu0 0
    %1418 = vmatprep.subr.bf16.mxu0 0
    %1419 = vmatpush1.bf16.msra.mxu0 0
    %1420 = vmatprep.subr.bf16.mxu0 0
    %1421 = vmatpush1.bf16.msra.mxu0 0
    %1422 = vmatprep.subr.bf16.mxu0 0
    %1423 = vmatpush1.bf16.msra.mxu0 0
    %1424 = vmatprep.subr.bf16.mxu0 0
    %1425 = vmatpush1.bf16.msra.mxu0 0
    %1426 = vmatprep.subr.bf16.mxu0 0
    %1427 = vmatpush1.bf16.msra.mxu0 0
    %1428 = vmatprep.subr.bf16.mxu0 0
    %1429 = vmatpush1.bf16.msra.mxu0 0
    %1430 = vmatprep.mubr.bf16.mxu0 0
    %1431 = vmatmul.mubr.bf16.gmra.mrb[0].mxu0 %v1393
    %v1432 = vpop.f32.mrb[0].mxu0
    %v1433 = vadd.f32 0.0, %v1432
    %v1434 = vpop.f32.mrb[0].mxu0
    %v1435 = vpop.f32.mrb[0].mxu0
    %v1436 = vpop.f32.mrb[0].mxu0
    %1437 = vdwg.mxu0
    %s1438 = scalar_lea.vmem [#allocation4], 48
    %v1439 = vld [vmem:[%s1438] sm:$0xf]
    %v1440 = vld [vmem:[%s1438 + $0x4] sm:$0xf]
    %v1441 = vld [vmem:[%s1438 + $0x8] sm:$0xf]
    %v1442 = vld [vmem:[%s1438 + $0xc] sm:$0xf]
    %v1443 = vpack.c.bf16 %v1433, %v1433
    %s1444 = scalar_lea.vmem [#allocation6], 3
    %v1445 = vld [vmem:[%s1444] sm:$0x1]
    %v1447 = vlaneseq
    %v1448 = vshrl.u32 %v1447, 7
    %v1449 = vsub.s32 0, %v1448
    %v1450 = vrot.slane %v1445, %v1449
    %v1456 = vunpack.c.l.b16 %v1439
    %v1457 = vunpack.c.l.b16 %v1440
    %v1458 = vunpack.c.l.b16 %v1441
    %v1459 = vunpack.c.l.b16 %v1442
    %v1460 = vpack.c.b16 %v1457, %v1456
    %v1461 = vpack.c.b16 %v1459, %v1458
    %v1465 = vsel %vm152, %v1443, 0
    %1467 = vmatprep.subr.bf16.mxu0 0
    %1468 = vmatpush1.bf16.msra.mxu0 %v1460
    %1469 = vmatprep.subr.bf16.mxu0 0
    %1470 = vmatpush1.bf16.msra.mxu0 %v1461
    %1471 = vmatprep.subr.bf16.mxu0 0
    %1472 = vmatpush1.bf16.msra.mxu0 0
    %1473 = vmatprep.subr.bf16.mxu0 0
    %1474 = vmatpush1.bf16.msra.mxu0 0
    %1475 = vmatprep.subr.bf16.mxu0 0
    %1476 = vmatpush1.bf16.msra.mxu0 0
    %1477 = vmatprep.subr.bf16.mxu0 0
    %1478 = vmatpush1.bf16.msra.mxu0 0
    %1479 = vmatprep.subr.bf16.mxu0 0
    %1480 = vmatpush1.bf16.msra.mxu0 0
    %1481 = vmatprep.subr.bf16.mxu0 0
    %1482 = vmatpush1.bf16.msra.mxu0 0
    %1483 = vmatprep.subr.bf16.mxu0 0
    %1484 = vmatpush1.bf16.msra.mxu0 0
    %1485 = vmatprep.subr.bf16.mxu0 0
    %1486 = vmatpush1.bf16.msra.mxu0 0
    %1487 = vmatprep.subr.bf16.mxu0 0
    %1488 = vmatpush1.bf16.msra.mxu0 0
    %1489 = vmatprep.subr.bf16.mxu0 0
    %1490 = vmatpush1.bf16.msra.mxu0 0
    %1491 = vmatprep.subr.bf16.mxu0 0
    %1492 = vmatpush1.bf16.msra.mxu0 0
    %1493 = vmatprep.subr.bf16.mxu0 0
    %1494 = vmatpush1.bf16.msra.mxu0 0
    %1495 = vmatprep.subr.bf16.mxu0 0
    %1496 = vmatpush1.bf16.msra.mxu0 0
    %1497 = vmatprep.subr.bf16.mxu0 0
    %1498 = vmatpush1.bf16.msra.mxu0 0
    %1499 = vmatprep.mubr.bf16.mxu0 0
    %1500 = vmatmul.mubr.bf16.gmra.mrb[0].mxu0 %v1465
    %v1501 = vpop.f32.mrb[0].mxu0
    %v1502 = vadd.f32 %v1450, %v1501
    %v1503 = vpop.f32.mrb[0].mxu0
    %v1504 = vpop.f32.mrb[0].mxu0
    %v1505 = vpop.f32.mrb[0].mxu0
    %1506 = vdwg.mxu0
    %s1507 = scalar_lea.vmem %s2, 64
    %v1508 = vld [vmem:[%s1507] sm:$0xf]
    %v1509 = vld [vmem:[%s1507 + $0x4] sm:$0xf]
    %v1510 = vld [vmem:[%s1507 + $0x8] sm:$0xf]
    %v1511 = vld [vmem:[%s1507 + $0xc] sm:$0xf]
    %v1512 = vpack.c.bf16 %v1258, %v1257
    %s1513 = scalar_lea.vmem [#allocation2], 4
    %v1514 = vld [vmem:[%s1513] sm:$0x1]
    %v1516 = vlaneseq
    %v1517 = vshrl.u32 %v1516, 7
    %v1518 = vsub.s32 0, %v1517
    %v1519 = vrot.slane %v1514, %v1518
    %v1525 = vunpack.c.l.b16 %v1508
    %v1526 = vunpack.c.l.b16 %v1509
    %v1527 = vunpack.c.l.b16 %v1510
    %v1528 = vunpack.c.l.b16 %v1511
    %v1529 = vpack.c.b16 %v1526, %v1525
    %v1530 = vpack.c.b16 %v1528, %v1527
    %v1534 = vsel %vm152, %v1512, 0
    %1536 = vmatprep.subr.bf16.mxu0 0
    %1537 = vmatpush1.bf16.msra.mxu0 %v1529
    %1538 = vmatprep.subr.bf16.mxu0 0
    %1539 = vmatpush1.bf16.msra.mxu0 %v1530
    %1540 = vmatprep.subr.bf16.mxu0 0
    %1541 = vmatpush1.bf16.msra.mxu0 0
    %1542 = vmatprep.subr.bf16.mxu0 0
    %1543 = vmatpush1.bf16.msra.mxu0 0
    %1544 = vmatprep.subr.bf16.mxu0 0
    %1545 = vmatpush1.bf16.msra.mxu0 0
    %1546 = vmatprep.subr.bf16.mxu0 0
    %1547 = vmatpush1.bf16.msra.mxu0 0
    %1548 = vmatprep.subr.bf16.mxu0 0
    %1549 = vmatpush1.bf16.msra.mxu0 0
    %1550 = vmatprep.subr.bf16.mxu0 0
    %1551 = vmatpush1.bf16.msra.mxu0 0
    %1552 = vmatprep.subr.bf16.mxu0 0
    %1553 = vmatpush1.bf16.msra.mxu0 0
    %1554 = vmatprep.subr.bf16.mxu0 0
    %1555 = vmatpush1.bf16.msra.mxu0 0
    %1556 = vmatprep.subr.bf16.mxu0 0
    %1557 = vmatpush1.bf16.msra.mxu0 0
    %1558 = vmatprep.subr.bf16.mxu0 0
    %1559 = vmatpush1.bf16.msra.mxu0 0
    %1560 = vmatprep.subr.bf16.mxu0 0
    %1561 = vmatpush1.bf16.msra.mxu0 0
    %1562 = vmatprep.subr.bf16.mxu0 0
    %1563 = vmatpush1.bf16.msra.mxu0 0
    %1564 = vmatprep.subr.bf16.mxu0 0
    %1565 = vmatpush1.bf16.msra.mxu0 0
    %1566 = vmatprep.subr.bf16.mxu0 0
    %1567 = vmatpush1.bf16.msra.mxu0 0
    %1568 = vmatprep.mubr.bf16.mxu0 0
    %1569 = vmatmul.mubr.bf16.gmra.mrb[0].mxu0 %v1534
    %v1570 = vpop.f32.mrb[0].mxu0
    %v1571 = vadd.f32 %v1519, %v1570
    %v1572 = vpop.f32.mrb[0].mxu0
    %v1573 = vpop.f32.mrb[0].mxu0
    %v1574 = vadd.f32 %v1519, %v1573
    %v1575 = vpop.f32.mrb[0].mxu0
    %1576 = vdwg.mxu0
    %v1577 = vpack.c.bf16 %v1574, %v1571
    %1579 = vrot.lane.b32.xlu0 %v1577, 96
    %v1580 = vpop.permute.xlu0 %1579
    %v1582 = vsel %vm152, %v1577, 0
    %v1585 = vsel %vm152, %v1580, 0
    %1587 = vmatprep.subr.bf16.mxu0 0
    %1588 = vmatpush1.bf16.xpose.msra.mxu0 %v1585
    %1589 = vmatprep.subr.bf16.mxu0 0
    %1590 = vmatpush1.bf16.xpose.msra.mxu0 0
    %1591 = vmatprep.subr.bf16.mxu0 0
    %1592 = vmatpush1.bf16.xpose.msra.mxu0 0
    %1593 = vmatprep.subr.bf16.mxu0 0
    %1594 = vmatpush1.bf16.xpose.msra.mxu0 0
    %1595 = vmatprep.subr.bf16.mxu0 0
    %1596 = vmatpush1.bf16.xpose.msra.mxu0 0
    %1597 = vmatprep.subr.bf16.mxu0 0
    %1598 = vmatpush1.bf16.xpose.msra.mxu0 0
    %1599 = vmatprep.subr.bf16.mxu0 0
    %1600 = vmatpush1.bf16.xpose.msra.mxu0 0
    %1601 = vmatprep.subr.bf16.mxu0 0
    %1602 = vmatpush1.bf16.xpose.msra.mxu0 0
    %1603 = vmatprep.subr.bf16.mxu0 0
    %1604 = vmatpush1.bf16.xpose.msra.mxu0 0
    %1605 = vmatprep.subr.bf16.mxu0 0
    %1606 = vmatpush1.bf16.xpose.msra.mxu0 0
    %1607 = vmatprep.subr.bf16.mxu0 0
    %1608 = vmatpush1.bf16.xpose.msra.mxu0 0
    %1609 = vmatprep.subr.bf16.mxu0 0
    %1610 = vmatpush1.bf16.xpose.msra.mxu0 0
    %1611 = vmatprep.subr.bf16.mxu0 0
    %1612 = vmatpush1.bf16.xpose.msra.mxu0 0
    %1613 = vmatprep.subr.bf16.mxu0 0
    %1614 = vmatpush1.bf16.xpose.msra.mxu0 0
    %1615 = vmatprep.subr.bf16.mxu0 0
    %1616 = vmatpush1.bf16.xpose.msra.mxu0 0
    %1617 = vmatprep.subr.bf16.mxu0 0
    %1618 = vmatpush1.bf16.xpose.msra.mxu0 0
    %1619 = vmatprep.mubr.bf16.mxu0 0
    %1620 = vmatmul.mubr.bf16.gmra.mrb[0].mxu0 %v1582
    %v1621 = vpop.f32.mrb[0].mxu0
    %v1622 = vadd.f32 0.0, %v1621
    %v1623 = vpop.f32.mrb[0].mxu0
    %v1624 = vpop.f32.mrb[0].mxu0
    %v1625 = vadd.f32 0.0, %v1624
    %v1626 = vpop.f32.mrb[0].mxu0
    %1627 = vdwg.mxu0
    %v1628 = vsel %vm500, %v1622, -inf
    %1629 = vmax.xlane.f32.xlu0 %v1628
    %v1630 = vpop.xlane.xlu0 %1629
    %v1631 = vsel %vm500, %v1625, -inf
    %1632 = vmax.xlane.f32.xlu0 %v1631
    %v1633 = vpop.xlane.xlu0 %1632
    %v1634 = vsub.f32 %v1622, %v1630
    %v1635 = vsub.f32 %v1625, %v1633
    %v1636 = vmul.f32 %v1634, 1.442695
    %v1637 = vpow.pop %v1636
    %v1638 = vmul.f32 %v1635, 1.442695
    %v1639 = vpow.pop %v1638
    %v1640 = vsel %vm500, %v1637, 0.0
    %1641 = vadd.xlane.f32.xlu0 %v1640
    %v1642 = vpop.xlane.xlu0 %1641
    %v1643 = vsel %vm500, %v1639, 0.0
    %1644 = vadd.xlane.f32.xlu0 %v1643
    %v1645 = vpop.xlane.xlu0 %1644
    %v1646 = vrcp.pop %v1642
    %v1647 = vrcp.pop %v1645
    %v1648 = vmul.f32 %v1637, %v1646
    %v1649 = vmul.f32 %v1639, %v1647
    %v1650 = vpack.c.bf16 %v1649, %v1648
    %1651 = vrot.lane.b32.xlu0 %v1577, 64
    %v1652 = vpop.permute.xlu0 %1651
    %v1655 = vsel %vm500, %v1650, 0
    %1657 = vmatprep.subr.bf16.mxu0 0
    %1658 = vmatpush1.bf16.msra.mxu0 %v1652
    %1659 = vmatprep.subr.bf16.mxu0 0
    %1660 = vmatpush1.bf16.msra.mxu0 0
    %1661 = vmatprep.subr.bf16.mxu0 0
    %1662 = vmatpush1.bf16.msra.mxu0 0
    %1663 = vmatprep.subr.bf16.mxu0 0
    %1664 = vmatpush1.bf16.msra.mxu0 0
    %1665 = vmatprep.subr.bf16.mxu0 0
    %1666 = vmatpush1.bf16.msra.mxu0 0
    %1667 = vmatprep.subr.bf16.mxu0 0
    %1668 = vmatpush1.bf16.msra.mxu0 0
    %1669 = vmatprep.subr.bf16.mxu0 0
    %1670 = vmatpush1.bf16.msra.mxu0 0
    %1671 = vmatprep.subr.bf16.mxu0 0
    %1672 = vmatpush1.bf16.msra.mxu0 0
    %1673 = vmatprep.subr.bf16.mxu0 0
    %1674 = vmatpush1.bf16.msra.mxu0 0
    %1675 = vmatprep.subr.bf16.mxu0 0
    %1676 = vmatpush1.bf16.msra.mxu0 0
    %1677 = vmatprep.subr.bf16.mxu0 0
    %1678 = vmatpush1.bf16.msra.mxu0 0
    %1679 = vmatprep.subr.bf16.mxu0 0
    %1680 = vmatpush1.bf16.msra.mxu0 0
    %1681 = vmatprep.subr.bf16.mxu0 0
    %1682 = vmatpush1.bf16.msra.mxu0 0
    %1683 = vmatprep.subr.bf16.mxu0 0
    %1684 = vmatpush1.bf16.msra.mxu0 0
    %1685 = vmatprep.subr.bf16.mxu0 0
    %1686 = vmatpush1.bf16.msra.mxu0 0
    %1687 = vmatprep.subr.bf16.mxu0 0
    %1688 = vmatpush1.bf16.msra.mxu0 0
    %1689 = vmatprep.mubr.bf16.mxu0 0
    %1690 = vmatmul.mubr.bf16.gmra.mrb[0].mxu0 %v1655
    %v1691 = vpop.f32.mrb[0].mxu0
    %v1692 = vadd.f32 0.0, %v1691
    %v1693 = vpop.f32.mrb[0].mxu0
    %v1694 = vpop.f32.mrb[0].mxu0
    %v1695 = vadd.f32 0.0, %v1694
    %v1696 = vpop.f32.mrb[0].mxu0
    %1697 = vdwg.mxu0
    %s1698 = scalar_lea.vmem [#allocation4], 64
    %v1699 = vld [vmem:[%s1698] sm:$0xf]
    %v1700 = vld [vmem:[%s1698 + $0x4] sm:$0xf]
    %v1701 = vld [vmem:[%s1698 + $0x8] sm:$0xf]
    %v1702 = vld [vmem:[%s1698 + $0xc] sm:$0xf]
    %v1703 = vpack.c.bf16 %v1695, %v1692
    %s1704 = scalar_lea.vmem [#allocation6], 4
    %v1705 = vld [vmem:[%s1704] sm:$0x1]
    %v1707 = vlaneseq
    %v1708 = vshrl.u32 %v1707, 7
    %v1709 = vsub.s32 0, %v1708
    %v1710 = vrot.slane %v1705, %v1709
    %v1716 = vunpack.c.l.b16 %v1699
    %v1717 = vunpack.c.l.b16 %v1700
    %v1718 = vunpack.c.l.b16 %v1701
    %v1719 = vunpack.c.l.b16 %v1702
    %v1720 = vpack.c.b16 %v1717, %v1716
    %v1721 = vpack.c.b16 %v1719, %v1718
    %v1725 = vsel %vm152, %v1703, 0
    %1727 = vmatprep.subr.bf16.mxu0 0
    %1728 = vmatpush1.bf16.msra.mxu0 %v1720
    %1729 = vmatprep.subr.bf16.mxu0 0
    %1730 = vmatpush1.bf16.msra.mxu0 %v1721
    %1731 = vmatprep.subr.bf16.mxu0 0
    %1732 = vmatpush1.bf16.msra.mxu0 0
    %1733 = vmatprep.subr.bf16.mxu0 0
    %1734 = vmatpush1.bf16.msra.mxu0 0
    %1735 = vmatprep.subr.bf16.mxu0 0
    %1736 = vmatpush1.bf16.msra.mxu0 0
    %1737 = vmatprep.subr.bf16.mxu0 0
    %1738 = vmatpush1.bf16.msra.mxu0 0
    %1739 = vmatprep.subr.bf16.mxu0 0
    %1740 = vmatpush1.bf16.msra.mxu0 0
    %1741 = vmatprep.subr.bf16.mxu0 0
    %1742 = vmatpush1.bf16.msra.mxu0 0
    %1743 = vmatprep.subr.bf16.mxu0 0
    %1744 = vmatpush1.bf16.msra.mxu0 0
    %1745 = vmatprep.subr.bf16.mxu0 0
    %1746 = vmatpush1.bf16.msra.mxu0 0
    %1747 = vmatprep.subr.bf16.mxu0 0
    %1748 = vmatpush1.bf16.msra.mxu0 0
    %1749 = vmatprep.subr.bf16.mxu0 0
    %1750 = vmatpush1.bf16.msra.mxu0 0
    %1751 = vmatprep.subr.bf16.mxu0 0
    %1752 = vmatpush1.bf16.msra.mxu0 0
    %1753 = vmatprep.subr.bf16.mxu0 0
    %1754 = vmatpush1.bf16.msra.mxu0 0
    %1755 = vmatprep.subr.bf16.mxu0 0
    %1756 = vmatpush1.bf16.msra.mxu0 0
    %1757 = vmatprep.subr.bf16.mxu0 0
    %1758 = vmatpush1.bf16.msra.mxu0 0
    %1759 = vmatprep.mubr.bf16.mxu0 0
    %1760 = vmatmul.mubr.bf16.gmra.mrb[0].mxu0 %v1725
    %v1761 = vpop.f32.mrb[0].mxu0
    %v1762 = vadd.f32 %v1710, %v1761
    %v1763 = vpop.f32.mrb[0].mxu0
    %v1764 = vpop.f32.mrb[0].mxu0
    %v1765 = vadd.f32 %v1710, %v1764
    %v1766 = vpop.f32.mrb[0].mxu0
    %1767 = vdwg.mxu0
    %s1768 = scalar_lea.vmem [#allocation9], 48
    %v1769 = vld [vmem:[%s1768] sm:$0xf]
    %v1770 = vld [vmem:[%s1768 + $0x4] sm:$0xf]
    %v1771 = vld [vmem:[%s1768 + $0x8] sm:$0xf]
    %v1772 = vld [vmem:[%s1768 + $0xc] sm:$0xf]
    %v1773 = vpack.c.bf16 %v1502, %v1502
    %s1774 = scalar_lea.vmem [#allocation10], 3
    %v1775 = vld [vmem:[%s1774] sm:$0x1]
    %v1777 = vlaneseq
    %v1778 = vshrl.u32 %v1777, 7
    %v1779 = vsub.s32 0, %v1778
    %v1780 = vrot.slane %v1775, %v1779
    %v1786 = vunpack.c.l.b16 %v1769
    %v1787 = vunpack.c.l.b16 %v1770
    %v1788 = vunpack.c.l.b16 %v1771
    %v1789 = vunpack.c.l.b16 %v1772
    %v1790 = vpack.c.b16 %v1787, %v1786
    %v1791 = vpack.c.b16 %v1789, %v1788
    %v1795 = vsel %vm152, %v1773, 0
    %1797 = vmatprep.subr.bf16.mxu0 0
    %1798 = vmatpush1.bf16.msra.mxu0 %v1790
    %1799 = vmatprep.subr.bf16.mxu0 0
    %1800 = vmatpush1.bf16.msra.mxu0 %v1791
    %1801 = vmatprep.subr.bf16.mxu0 0
    %1802 = vmatpush1.bf16.msra.mxu0 0
    %1803 = vmatprep.subr.bf16.mxu0 0
    %1804 = vmatpush1.bf16.msra.mxu0 0
    %1805 = vmatprep.subr.bf16.mxu0 0
    %1806 = vmatpush1.bf16.msra.mxu0 0
    %1807 = vmatprep.subr.bf16.mxu0 0
    %1808 = vmatpush1.bf16.msra.mxu0 0
    %1809 = vmatprep.subr.bf16.mxu0 0
    %1810 = vmatpush1.bf16.msra.mxu0 0
    %1811 = vmatprep.subr.bf16.mxu0 0
    %1812 = vmatpush1.bf16.msra.mxu0 0
    %1813 = vmatprep.subr.bf16.mxu0 0
    %1814 = vmatpush1.bf16.msra.mxu0 0
    %1815 = vmatprep.subr.bf16.mxu0 0
    %1816 = vmatpush1.bf16.msra.mxu0 0
    %1817 = vmatprep.subr.bf16.mxu0 0
    %1818 = vmatpush1.bf16.msra.mxu0 0
    %1819 = vmatprep.subr.bf16.mxu0 0
    %1820 = vmatpush1.bf16.msra.mxu0 0
    %1821 = vmatprep.subr.bf16.mxu0 0
    %1822 = vmatpush1.bf16.msra.mxu0 0
    %1823 = vmatprep.subr.bf16.mxu0 0
    %1824 = vmatpush1.bf16.msra.mxu0 0
    %1825 = vmatprep.subr.bf16.mxu0 0
    %1826 = vmatpush1.bf16.msra.mxu0 0
    %1827 = vmatprep.subr.bf16.mxu0 0
    %1828 = vmatpush1.bf16.msra.mxu0 0
    %1829 = vmatprep.mubr.bf16.mxu0 0
    %1830 = vmatmul.mubr.bf16.gmra.mrb[0].mxu0 %v1795
    %v1831 = vpop.f32.mrb[0].mxu0
    %v1832 = vadd.f32 %v1780, %v1831
    %v1833 = vpop.f32.mrb[0].mxu0
    %v1834 = vpop.f32.mrb[0].mxu0
    %v1835 = vpop.f32.mrb[0].mxu0
    %1836 = vdwg.mxu0
    %s1837 = scalar_lea.vmem [#allocation7], 48
    %v1838 = vld [vmem:[%s1837] sm:$0xf]
    %v1839 = vld [vmem:[%s1837 + $0x4] sm:$0xf]
    %v1840 = vld [vmem:[%s1837 + $0x8] sm:$0xf]
    %v1841 = vld [vmem:[%s1837 + $0xc] sm:$0xf]
    %v1842 = vpack.c.bf16 %v1765, %v1762
    %v1847 = vunpack.c.l.b16 %v1838
    %v1848 = vunpack.c.l.b16 %v1839
    %v1849 = vunpack.c.l.b16 %v1840
    %v1850 = vunpack.c.l.b16 %v1841
    %v1851 = vpack.c.b16 %v1848, %v1847
    %v1852 = vpack.c.b16 %v1850, %v1849
    %v1856 = vsel %vm152, %v1842, 0
    %1858 = vmatprep.subr.bf16.mxu0 0
    %1859 = vmatpush1.bf16.msra.mxu0 %v1851
    %1860 = vmatprep.subr.bf16.mxu0 0
    %1861 = vmatpush1.bf16.msra.mxu0 %v1852
    %1862 = vmatprep.subr.bf16.mxu0 0
    %1863 = vmatpush1.bf16.msra.mxu0 0
    %1864 = vmatprep.subr.bf16.mxu0 0
    %1865 = vmatpush1.bf16.msra.mxu0 0
    %1866 = vmatprep.subr.bf16.mxu0 0
    %1867 = vmatpush1.bf16.msra.mxu0 0
    %1868 = vmatprep.subr.bf16.mxu0 0
    %1869 = vmatpush1.bf16.msra.mxu0 0
    %1870 = vmatprep.subr.bf16.mxu0 0
    %1871 = vmatpush1.bf16.msra.mxu0 0
    %1872 = vmatprep.subr.bf16.mxu0 0
    %1873 = vmatpush1.bf16.msra.mxu0 0
    %1874 = vmatprep.subr.bf16.mxu0 0
    %1875 = vmatpush1.bf16.msra.mxu0 0
    %1876 = vmatprep.subr.bf16.mxu0 0
    %1877 = vmatpush1.bf16.msra.mxu0 0
    %1878 = vmatprep.subr.bf16.mxu0 0
    %1879 = vmatpush1.bf16.msra.mxu0 0
    %1880 = vmatprep.subr.bf16.mxu0 0
    %1881 = vmatpush1.bf16.msra.mxu0 0
    %1882 = vmatprep.subr.bf16.mxu0 0
    %1883 = vmatpush1.bf16.msra.mxu0 0
    %1884 = vmatprep.subr.bf16.mxu0 0
    %1885 = vmatpush1.bf16.msra.mxu0 0
    %1886 = vmatprep.subr.bf16.mxu0 0
    %1887 = vmatpush1.bf16.msra.mxu0 0
    %1888 = vmatprep.subr.bf16.mxu0 0
    %1889 = vmatpush1.bf16.msra.mxu0 0
    %1890 = vmatprep.mubr.bf16.mxu0 0
    %1891 = vmatmul.mubr.bf16.gmra.mrb[0].mxu0 %v1856
    %v1892 = vpop.f32.mrb[0].mxu0
    %v1893 = vadd.f32 0.0, %v1892
    %v1894 = vpop.f32.mrb[0].mxu0
    %v1895 = vpop.f32.mrb[0].mxu0
    %v1896 = vadd.f32 0.0, %v1895
    %v1897 = vpop.f32.mrb[0].mxu0
    %1898 = vdwg.mxu0
    %v1899 = vpack.c.bf16 %v1896, %v1893
    %1900 = vmatprep.subr.bf16.mxu0 0
    %1901 = vmatpush1.bf16.msra.mxu0 %v1899
    %1902 = vmatprep.subr.bf16.mxu0 0
    %1903 = vmatpush1.bf16.msra.mxu0 0
    %1904 = vmatprep.subr.bf16.mxu0 0
    %1905 = vmatpush1.bf16.msra.mxu0 0
    %1906 = vmatprep.subr.bf16.mxu0 0
    %1907 = vmatpush1.bf16.msra.mxu0 0
    %1908 = vmatprep.subr.bf16.mxu0 0
    %1909 = vmatpush1.bf16.msra.mxu0 0
    %1910 = vmatprep.subr.bf16.mxu0 0
    %1911 = vmatpush1.bf16.msra.mxu0 0
    %1912 = vmatprep.subr.bf16.mxu0 0
    %1913 = vmatpush1.bf16.msra.mxu0 0
    %1914 = vmatprep.subr.bf16.mxu0 0
    %1915 = vmatpush1.bf16.msra.mxu0 0
    %1916 = vmatprep.subr.bf16.mxu0 0
    %1917 = vmatpush1.bf16.msra.mxu0 0
    %1918 = vmatprep.subr.bf16.mxu0 0
    %1919 = vmatpush1.bf16.msra.mxu0 0
    %1920 = vmatprep.subr.bf16.mxu0 0
    %1921 = vmatpush1.bf16.msra.mxu0 0
    %1922 = vmatprep.subr.bf16.mxu0 0
    %1923 = vmatpush1.bf16.msra.mxu0 0
    %1924 = vmatprep.subr.bf16.mxu0 0
    %1925 = vmatpush1.bf16.msra.mxu0 0
    %1926 = vmatprep.subr.bf16.mxu0 0
    %1927 = vmatpush1.bf16.msra.mxu0 0
    %1928 = vmatprep.subr.bf16.mxu0 0
    %1929 = vmatpush1.bf16.msra.mxu0 0
    %1930 = vmatprep.subr.bf16.mxu0 0
    %1931 = vmatpush1.bf16.msra.mxu0 0
    %1932 = vmatprep.mubr.bf16.mxu0 0
    %1933 = vmatmul.mubr.bf16.gmra.mrb[0].mxu0 %v1102
    %v1934 = vpop.f32.mrb[0].mxu0
    %v1935 = vadd.f32 0.0, %v1934
    %v1936 = vpop.f32.mrb[0].mxu0
    %v1937 = vpop.f32.mrb[0].mxu0
    %v1938 = vpop.f32.mrb[0].mxu0
    %1939 = vdwg.mxu0
    %v1940 = vadd.f32 %v1832, %v1935
    %v1941 = vld [vmem:[%s9] sm:$0xff]
    %v1942 = vld [vmem:[%s9 + $0x8] sm:$0xff]
    %v1943 = vld [vmem:[%s9 + $0x10] sm:$0xff]
    %v1944 = vld [vmem:[%s9 + $0x18] sm:$0xff]
    %v1945 = vld [vmem:[%s10] sm:$0x1]
    %v1947 = vlaneseq
    %v1948 = vshrl.u32 %v1947, 7
    %v1949 = vsub.s32 0, %v1948
    %v1950 = vrot.slane %v1945, %v1949
    %v1953 = vsel %vm152, %v1940, 0
    %1955 = vmatprep.subr.mxu0 0.0
    %1956 = vmatpush1.msra.mxu0 %v1941
    %1957 = vmatprep.subr.mxu0 0.0
    %1958 = vmatpush1.msra.mxu0 %v1942
    %1959 = vmatprep.subr.mxu0 0.0
    %1960 = vmatpush1.msra.mxu0 %v1943
    %1961 = vmatprep.subr.mxu0 0.0
    %1962 = vmatpush1.msra.mxu0 %v1944
    %1963 = vmatprep.subr.mxu0 0.0
    %1964 = vmatpush1.msra.mxu0 0.0
    %1965 = vmatprep.subr.mxu0 0.0
    %1966 = vmatpush1.msra.mxu0 0.0
    %1967 = vmatprep.subr.mxu0 0.0
    %1968 = vmatpush1.msra.mxu0 0.0
    %1969 = vmatprep.subr.mxu0 0.0
    %1970 = vmatpush1.msra.mxu0 0.0
    %1971 = vmatprep.subr.mxu0 0.0
    %1972 = vmatpush1.msra.mxu0 0.0
    %1973 = vmatprep.subr.mxu0 0.0
    %1974 = vmatpush1.msra.mxu0 0.0
    %1975 = vmatprep.subr.mxu0 0.0
    %1976 = vmatpush1.msra.mxu0 0.0
    %1977 = vmatprep.subr.mxu0 0.0
    %1978 = vmatpush1.msra.mxu0 0.0
    %1979 = vmatprep.subr.mxu0 0.0
    %1980 = vmatpush1.msra.mxu0 0.0
    %1981 = vmatprep.subr.mxu0 0.0
    %1982 = vmatpush1.msra.mxu0 0.0
    %1983 = vmatprep.subr.mxu0 0.0
    %1984 = vmatpush1.msra.mxu0 0.0
    %1985 = vmatprep.subr.mxu0 0.0
    %1986 = vmatpush1.msra.mxu0 0.0
    %1987 = vmatprep.subr.mxu0 0.0
    %1988 = vmatpush1.msra.mxu0 0.0
    %1989 = vmatprep.subr.mxu0 0.0
    %1990 = vmatpush1.msra.mxu0 0.0
    %1991 = vmatprep.subr.mxu0 0.0
    %1992 = vmatpush1.msra.mxu0 0.0
    %1993 = vmatprep.subr.mxu0 0.0
    %1994 = vmatpush1.msra.mxu0 0.0
    %1995 = vmatprep.subr.mxu0 0.0
    %1996 = vmatpush1.msra.mxu0 0.0
    %1997 = vmatprep.subr.mxu0 0.0
    %1998 = vmatpush1.msra.mxu0 0.0
    %1999 = vmatprep.subr.mxu0 0.0
    %2000 = vmatpush1.msra.mxu0 0.0
    %2001 = vmatprep.subr.mxu0 0.0
    %2002 = vmatpush1.msra.mxu0 0.0
    %2003 = vmatprep.subr.mxu0 0.0
    %2004 = vmatpush1.msra.mxu0 0.0
    %2005 = vmatprep.subr.mxu0 0.0
    %2006 = vmatpush1.msra.mxu0 0.0
    %2007 = vmatprep.subr.mxu0 0.0
    %2008 = vmatpush1.msra.mxu0 0.0
    %2009 = vmatprep.subr.mxu0 0.0
    %2010 = vmatpush1.msra.mxu0 0.0
    %2011 = vmatprep.subr.mxu0 0.0
    %2012 = vmatpush1.msra.mxu0 0.0
    %2013 = vmatprep.subr.mxu0 0.0
    %2014 = vmatpush1.msra.mxu0 0.0
    %2015 = vmatprep.subr.mxu0 0.0
    %2016 = vmatpush1.msra.mxu0 0.0
    %2017 = vmatprep.subr.mxu0 0.0
    %2018 = vmatpush1.msra.mxu0 0.0
    %2019 = vmatprep.mubr.f32.mxu0 0.0
    %2020 = vmatmul.mubr.f32.gmra.mrb[0].mxu0 %v1953
    %v2021 = vpop.f32.mrb[0].mxu0
    %v2022 = vadd.f32 %v1950, %v2021
    %v2023 = vpop.f32.mrb[0].mxu0
    %2024 = vdwg.mxu0
    %vm2025 = vcmask 31744
    %v2026 = vsel %vm2025, %v2022, -inf
    %2027 = vmax.xlane.f32.xlu0 %v2026
    %v2028 = vpop.xlane.xlu0 %2027
    %v2029 = vsub.f32 %v2022, %v2028
    %v2030 = vmul.f32 %v2029, 1.442695
    %v2031 = vpow.pop %v2030
    %v2032 = vsel %vm2025, %v2031, 0.0
    %2033 = vadd.xlane.f32.xlu0 %v2032
    %v2034 = vpop.xlane.xlu0 %2033
    %v2035 = vrcp.pop %v2034
    %v2036 = vmul.f32 %v2031, %v2035
    %2037 = vst.msk [vmem:[%s11] sm:$0xff] %vm2025, %v2036
    // Predicated region
    $region70: #{forward.1} parent=1 // pred_check
      _
    $region71: #{forward.1} parent=1 // pred_check_branch
      %2039 = sbr.rel (0) target = $region73
    $region72: #{forward.1} parent=1 // pred_region
      _
    $region73: #{forward.1} parent=1 // pred_fallthru
      _
    // Predicated region
    $region74: #{forward.1} parent=1 // pred_check
      _
    $region75: #{forward.1} parent=1 // pred_check_branch
      %2041 = sbr.rel (0) target = $region77
    $region76: #{forward.1} parent=1 // pred_region
      _
    $region77: #{forward.1} parent=1 // pred_fallthru
      _
    %2042 = vsyncpa [#allocation3], 1
    %2043 = vsyncpa [#allocation5], 1
    %2044 = vsyncpa [#allocation8], 1
    %2045 = vsyncpa [#allocation11], 1

</llo_original>
